<compile_context>
chip_gen: v5e
topology: v5e:2x2
jax: 0.10.0
libtpu: 0.0.40
codegen_flags: <defaults>
</compile_context>

<pallas_src>
import math

import jax
import jax.numpy as jnp
from jax.experimental import pallas as pl
from jax.experimental.pallas import tpu as pltpu


def make_mha_kernel(heads, d_k, scale):
    def kernel(q_ref, k_ref, v_ref, mask_ref,
               wq_ref, bq_ref, wk_ref, bk_ref, wv_ref, bv_ref, wo_ref, bo_ref,
               o_ref):
        S, D = o_ref.shape[1], o_ref.shape[2]

        # bf16 operands for the MXU; accumulation stays f32.
        xq = q_ref[0].astype(jnp.bfloat16)          # (S, D)
        xk = k_ref[0].astype(jnp.bfloat16)
        xv = v_ref[0].astype(jnp.bfloat16)

        Q = jnp.dot(xq, wq_ref[...], preferred_element_type=jnp.float32) + bq_ref[...]
        K = jnp.dot(xk, wk_ref[...], preferred_element_type=jnp.float32) + bk_ref[...]
        V = jnp.dot(xv, wv_ref[...], preferred_element_type=jnp.float32) + bv_ref[...]

        Qb = Q.astype(jnp.bfloat16)                 # (S, D)
        Kb = K.astype(jnp.bfloat16)
        Vb = V.astype(jnp.bfloat16)

        # Hoisted mask bias: select -> add, computed once for all heads (f32
        # so the -1e9 sentinel survives exactly as in the PyTorch module).
        bias = jnp.where(mask_ref[0] == 0.0,
                         jnp.float32(-1000000000.0), jnp.float32(0.0))  # (S, S)

        acc = jnp.zeros((S, D), jnp.float32)
        for h in range(heads):    # static Python loop; heads is small & static
            lo = h * d_k
            qh = Qb[:, lo:lo + d_k]                 # (S, d_k) bf16
            kh = Kb[:, lo:lo + d_k]
            vh = Vb[:, lo:lo + d_k]

            # q_h @ k_h^T on the MXU, f32 accumulate (no explicit transpose).
            s = jax.lax.dot_general(
                qh, kh, (((1,), (1,)), ((), ())),
                preferred_element_type=jnp.float32)  # (S, S)
            s = s * scale + bias

            m = jnp.max(s, axis=-1, keepdims=True)
            e = jnp.exp(s - m)
            r = jnp.sum(e, axis=-1, keepdims=True)
            p = (e * pl.reciprocal(r, approx=True)).astype(jnp.bfloat16)
            # TODO(synk): nn.Dropout(0.1) on attention probs omitted (eval-mode identity).

            oh = jnp.dot(p, vh, preferred_element_type=jnp.float32)     # (S, d_k)
            # Accumulate the output projection per head -> no lane concat.
            acc = acc + jnp.dot(oh.astype(jnp.bfloat16),
                                wo_ref[lo:lo + d_k, :],
                                preferred_element_type=jnp.float32)     # (S, D)

        o_ref[0] = (acc + bo_ref[...]).astype(o_ref.dtype)

    return kernel


def multi_head_attention(q, k, v, mask, params, heads):
    B, S, D = q.shape
    d_k = D // heads
    scale = 1.0 / math.sqrt(d_k)
    kernel = make_mha_kernel(heads, d_k, scale)

    # bf16 weights for the MXU (halves weight DMA bytes + VMEM); biases stay f32.
    wq = params["wq"].astype(jnp.bfloat16)
    wk = params["wk"].astype(jnp.bfloat16)
    wv = params["wv"].astype(jnp.bfloat16)
    wo = params["wo"].astype(jnp.bfloat16)

    x_spec = pl.BlockSpec((1, S, D), lambda b: (b, 0, 0))
    m_spec = pl.BlockSpec((1, S, S), lambda b: (b, 0, 0))
    w_spec = pl.BlockSpec((D, D), lambda b: (0, 0))
    b_spec = pl.BlockSpec((1, D), lambda b: (0, 0))

    return pl.pallas_call(
        kernel,
        out_shape=jax.ShapeDtypeStruct((B, S, D), q.dtype),
        grid=(B,),
        in_specs=[x_spec, x_spec, x_spec, m_spec,
                  w_spec, b_spec, w_spec, b_spec,
                  w_spec, b_spec, w_spec, b_spec],
        out_specs=x_spec,
        compiler_params=pltpu.CompilerParams(
            dimension_semantics=("parallel",),
            vmem_limit_bytes=32 * 1024 * 1024),
    )(q, k, v, mask,
      wq, params["bq"], wk, params["bk"],
      wv, params["bv"], wo, params["bo"])


def reference_mha(q, k, v, mask, params, heads):
    """Pure-JAX f32 reference mirroring the PyTorch forward (mask given, eval mode)."""
    B, S, D = q.shape
    d_k = D // heads
    Q = q @ params["wq"] + params["bq"][0]
    K = k @ params["wk"] + params["bk"][0]
    V = v @ params["wv"] + params["bv"][0]
    Qh = Q.reshape(B, S, heads, d_k).transpose(0, 2, 1, 3)
    Kh = K.reshape(B, S, heads, d_k).transpose(0, 2, 1, 3)
    Vh = V.reshape(B, S, heads, d_k).transpose(0, 2, 1, 3)
    scores = jnp.einsum("bhqd,bhkd->bhqk", Qh, Kh) / math.sqrt(d_k)
    scores = jnp.where(mask[:, None] == 0, -1000000000.0, scores)
    p = jax.nn.softmax(scores, axis=-1)
    o = jnp.einsum("bhqk,bhkd->bhqd", p, Vh)
    concat = o.transpose(0, 2, 1, 3).reshape(B, S, D)
    return concat @ params["wo"] + params["bo"][0]


if __name__ == "__main__":
    B, S, D, H = 2, 16, 128, 4    # batch, seq, d_model, heads  (d_k = 32)

    key = jax.random.PRNGKey(0)
    keys = jax.random.split(key, 12)
    bound = 1.0 / math.sqrt(D)    # PyTorch nn.Linear default init range

    def uni(k, shape):
        return jax.random.uniform(k, shape, jnp.float32, -bound, bound)

    params = {
        "wq": uni(keys[0], (D, D)), "bq": uni(keys[1], (1, D)),
        "wk": uni(keys[2], (D, D)), "bk": uni(keys[3], (1, D)),
        "wv": uni(keys[4], (D, D)), "bv": uni(keys[5], (1, D)),
        "wo": uni(keys[6], (D, D)), "bo": uni(keys[7], (1, D)),
    }

    q = jax.random.normal(keys[8], (B, S, D), jnp.float32)
    k = jax.random.normal(keys[9], (B, S, D), jnp.float32)
    v = jax.random.normal(keys[10], (B, S, D), jnp.float32)
    # causal mask: 1 where attending allowed, 0 where masked (PyTorch mask==0 -> -1e9)
    mask = jnp.tril(jnp.ones((S, S), jnp.float32))[None].repeat(B, axis=0)

    out = multi_head_attention(q, k, v, mask, params, H)
    out = jax.block_until_ready(out)

    ref = reference_mha(q, k, v, mask, params, H)
    assert out.shape == (B, S, D)
    # Tolerance loosened vs v1: bf16 MXU operands + approx reciprocal (f32 accumulate).
    assert jnp.allclose(out, ref, atol=2e-2, rtol=2e-2), "mismatch vs reference"

    print("KERNEL_OK")
</pallas_src>

<mosaic_0001>
module attributes {stable_mosaic.version = 11 : i64} {
  func.func @kernel(%arg0: i32, %arg1: memref<1x16x128xf32, #tpu.memory_space<vmem>>, %arg2: memref<1x16x128xf32, #tpu.memory_space<vmem>>, %arg3: memref<1x16x128xf32, #tpu.memory_space<vmem>>, %arg4: memref<1x16x16xf32, #tpu.memory_space<vmem>>, %arg5: memref<128x128xbf16, #tpu.memory_space<vmem>>, %arg6: memref<1x128xf32, #tpu.memory_space<vmem>>, %arg7: memref<128x128xbf16, #tpu.memory_space<vmem>>, %arg8: memref<1x128xf32, #tpu.memory_space<vmem>>, %arg9: memref<128x128xbf16, #tpu.memory_space<vmem>>, %arg10: memref<1x128xf32, #tpu.memory_space<vmem>>, %arg11: memref<128x128xbf16, #tpu.memory_space<vmem>>, %arg12: memref<1x128xf32, #tpu.memory_space<vmem>>, %arg13: memref<1x16x128xf32, #tpu.memory_space<vmem>>) attributes {dimension_semantics = [#tpu.dimension_semantics<parallel>], iteration_bounds = array<i64: 2>, scalar_prefetch = 0 : i64, scratch_operands = 0 : i64, tpu.core_type = #tpu.core_type<tc>, window_params = [{transform_indices = @transform_0, window_bounds = array<i64: 1, 16, 128>}, {transform_indices = @transform_1, window_bounds = array<i64: 1, 16, 128>}, {transform_indices = @transform_2, window_bounds = array<i64: 1, 16, 128>}, {transform_indices = @transform_3, window_bounds = array<i64: 1, 16, 16>}, {pipeline_mode = #tpu.pipeline_mode<synchronous>, transform_indices = @transform_4, window_bounds = array<i64: 128, 128>}, {pipeline_mode = #tpu.pipeline_mode<synchronous>, transform_indices = @transform_5, window_bounds = array<i64: 1, 128>}, {pipeline_mode = #tpu.pipeline_mode<synchronous>, transform_indices = @transform_6, window_bounds = array<i64: 128, 128>}, {pipeline_mode = #tpu.pipeline_mode<synchronous>, transform_indices = @transform_7, window_bounds = array<i64: 1, 128>}, {pipeline_mode = #tpu.pipeline_mode<synchronous>, transform_indices = @transform_8, window_bounds = array<i64: 128, 128>}, {pipeline_mode = #tpu.pipeline_mode<synchronous>, transform_indices = @transform_9, window_bounds = array<i64: 1, 128>}, {pipeline_mode = #tpu.pipeline_mode<synchronous>, transform_indices = @transform_10, window_bounds = array<i64: 128, 128>}, {pipeline_mode = #tpu.pipeline_mode<synchronous>, transform_indices = @transform_11, window_bounds = array<i64: 1, 128>}, {transform_indices = @transform_12, window_bounds = array<i64: 1, 16, 128>}]} {
    %c0 = arith.constant 0 : index
    %c0_0 = arith.constant 0 : index
    %c0_1 = arith.constant 0 : index
    %0 = vector.load %arg1[%c0, %c0_0, %c0_1] : memref<1x16x128xf32, #tpu.memory_space<vmem>>, vector<1x16x128xf32>
    %1 = vector.shape_cast %0 : vector<1x16x128xf32> to vector<16x128xf32>
    %2 = arith.truncf %1 : vector<16x128xf32> to vector<16x128xbf16>
    %c0_2 = arith.constant 0 : index
    %c0_3 = arith.constant 0 : index
    %c0_4 = arith.constant 0 : index
    %3 = vector.load %arg2[%c0_2, %c0_3, %c0_4] : memref<1x16x128xf32, #tpu.memory_space<vmem>>, vector<1x16x128xf32>
    %4 = vector.shape_cast %3 : vector<1x16x128xf32> to vector<16x128xf32>
    %5 = arith.truncf %4 : vector<16x128xf32> to vector<16x128xbf16>
    %c0_5 = arith.constant 0 : index
    %c0_6 = arith.constant 0 : index
    %c0_7 = arith.constant 0 : index
    %6 = vector.load %arg3[%c0_5, %c0_6, %c0_7] : memref<1x16x128xf32, #tpu.memory_space<vmem>>, vector<1x16x128xf32>
    %7 = vector.shape_cast %6 : vector<1x16x128xf32> to vector<16x128xf32>
    %8 = arith.truncf %7 : vector<16x128xf32> to vector<16x128xbf16>
    %c0_8 = arith.constant 0 : index
    %c0_9 = arith.constant 0 : index
    %9 = vector.load %arg5[%c0_8, %c0_9] : memref<128x128xbf16, #tpu.memory_space<vmem>>, vector<128x128xbf16>
    %cst = arith.constant dense<0.000000e+00> : vector<16x128xf32>
    %10 = tpu.matmul %2, %9, %cst {dimension_numbers = #tpu.dot_dimension_numbers<[1], [0], [0], [1], [0, 0, 1, 1], [], []>} : vector<16x128xbf16>, vector<128x128xbf16>, vector<16x128xf32> -> vector<16x128xf32>
    %c0_10 = arith.constant 0 : index
    %c0_11 = arith.constant 0 : index
    %11 = vector.load %arg6[%c0_10, %c0_11] : memref<1x128xf32, #tpu.memory_space<vmem>>, vector<1x128xf32>
    %12 = vector.broadcast %11 : vector<1x128xf32> to vector<16x128xf32>
    %13 = arith.addf %10, %12 : vector<16x128xf32>
    %c0_12 = arith.constant 0 : index
    %c0_13 = arith.constant 0 : index
    %14 = vector.load %arg7[%c0_12, %c0_13] : memref<128x128xbf16, #tpu.memory_space<vmem>>, vector<128x128xbf16>
    %cst_14 = arith.constant dense<0.000000e+00> : vector<16x128xf32>
    %15 = tpu.matmul %5, %14, %cst_14 {dimension_numbers = #tpu.dot_dimension_numbers<[1], [0], [0], [1], [0, 0, 1, 1], [], []>} : vector<16x128xbf16>, vector<128x128xbf16>, vector<16x128xf32> -> vector<16x128xf32>
    %c0_15 = arith.constant 0 : index
    %c0_16 = arith.constant 0 : index
    %16 = vector.load %arg8[%c0_15, %c0_16] : memref<1x128xf32, #tpu.memory_space<vmem>>, vector<1x128xf32>
    %17 = vector.broadcast %16 : vector<1x128xf32> to vector<16x128xf32>
    %18 = arith.addf %15, %17 : vector<16x128xf32>
    %c0_17 = arith.constant 0 : index
    %c0_18 = arith.constant 0 : index
    %19 = vector.load %arg9[%c0_17, %c0_18] : memref<128x128xbf16, #tpu.memory_space<vmem>>, vector<128x128xbf16>
    %cst_19 = arith.constant dense<0.000000e+00> : vector<16x128xf32>
    %20 = tpu.matmul %8, %19, %cst_19 {dimension_numbers = #tpu.dot_dimension_numbers<[1], [0], [0], [1], [0, 0, 1, 1], [], []>} : vector<16x128xbf16>, vector<128x128xbf16>, vector<16x128xf32> -> vector<16x128xf32>
    %c0_20 = arith.constant 0 : index
    %c0_21 = arith.constant 0 : index
    %21 = vector.load %arg10[%c0_20, %c0_21] : memref<1x128xf32, #tpu.memory_space<vmem>>, vector<1x128xf32>
    %22 = vector.broadcast %21 : vector<1x128xf32> to vector<16x128xf32>
    %23 = arith.addf %20, %22 : vector<16x128xf32>
    %24 = arith.truncf %13 : vector<16x128xf32> to vector<16x128xbf16>
    %25 = arith.truncf %18 : vector<16x128xf32> to vector<16x128xbf16>
    %26 = arith.truncf %23 : vector<16x128xf32> to vector<16x128xbf16>
    %c0_22 = arith.constant 0 : index
    %c0_23 = arith.constant 0 : index
    %c0_24 = arith.constant 0 : index
    %27 = vector.load %arg4[%c0_22, %c0_23, %c0_24] : memref<1x16x16xf32, #tpu.memory_space<vmem>>, vector<1x16x16xf32>
    %28 = vector.shape_cast %27 : vector<1x16x16xf32> to vector<16x16xf32>
    %cst_25 = arith.constant 0.000000e+00 : f32
    %29 = vector.broadcast %cst_25 : f32 to vector<16x16xf32>
    %30 = arith.cmpf oeq, %28, %29 : vector<16x16xf32>
    %cst_26 = arith.constant -1.000000e+09 : f32
    %cst_27 = arith.constant 0.000000e+00 : f32
    %31 = vector.broadcast %cst_26 : f32 to vector<16x16xf32>
    %32 = vector.broadcast %cst_27 : f32 to vector<16x16xf32>
    %33 = arith.select %30, %31, %32 : vector<16x16xi1>, vector<16x16xf32>
    %cst_28 = arith.constant 0.000000e+00 : f32
    %34 = vector.broadcast %cst_28 : f32 to vector<16x128xf32>
    %35 = vector.extract_strided_slice %24 {offsets = [0, 0], sizes = [16, 32], strides = [1, 1]} : vector<16x128xbf16> to vector<16x32xbf16>
    %36 = vector.extract_strided_slice %25 {offsets = [0, 0], sizes = [16, 32], strides = [1, 1]} : vector<16x128xbf16> to vector<16x32xbf16>
    %37 = vector.extract_strided_slice %26 {offsets = [0, 0], sizes = [16, 32], strides = [1, 1]} : vector<16x128xbf16> to vector<16x32xbf16>
    %cst_29 = arith.constant dense<0.000000e+00> : vector<16x16xf32>
    %38 = tpu.matmul %35, %36, %cst_29 {dimension_numbers = #tpu.dot_dimension_numbers<[1], [1], [0], [0], [0, 0, 1, 0], [], []>} : vector<16x32xbf16>, vector<16x32xbf16>, vector<16x16xf32> -> vector<16x16xf32>
    %cst_30 = arith.constant 0.176776692 : f32
    %39 = vector.broadcast %cst_30 : f32 to vector<16x16xf32>
    %40 = arith.mulf %38, %39 : vector<16x16xf32>
    %41 = arith.addf %40, %33 : vector<16x16xf32>
    %cst_31 = arith.constant dense<0xFF800000> : vector<16xf32>
    %42 = vector.multi_reduction <maximumf>, %41, %cst_31 [1] : vector<16x16xf32> to vector<16xf32>
    %43 = vector.shape_cast %42 : vector<16xf32> to vector<16x1xf32>
    %44 = vector.broadcast %43 : vector<16x1xf32> to vector<16x16xf32>
    %45 = arith.subf %41, %44 : vector<16x16xf32>
    %46 = math.exp %45 : vector<16x16xf32>
    %cst_32 = arith.constant dense<0.000000e+00> : vector<16xf32>
    %47 = vector.multi_reduction <add>, %46, %cst_32 [1] : vector<16x16xf32> to vector<16xf32>
    %48 = vector.shape_cast %47 : vector<16xf32> to vector<16x1xf32>
    %49 = tpu.reciprocal %48 {approx = true} : vector<16x1xf32> -> vector<16x1xf32>
    %50 = vector.broadcast %49 : vector<16x1xf32> to vector<16x16xf32>
    %51 = arith.mulf %46, %50 : vector<16x16xf32>
    %52 = arith.truncf %51 : vector<16x16xf32> to vector<16x16xbf16>
    %cst_33 = arith.constant dense<0.000000e+00> : vector<16x32xf32>
    %53 = tpu.matmul %52, %37, %cst_33 {dimension_numbers = #tpu.dot_dimension_numbers<[1], [0], [0], [1], [0, 0, 1, 1], [], []>} : vector<16x16xbf16>, vector<16x32xbf16>, vector<16x32xf32> -> vector<16x32xf32>
    %54 = arith.truncf %53 : vector<16x32xf32> to vector<16x32xbf16>
    %c0_34 = arith.constant 0 : index
    %c0_35 = arith.constant 0 : index
    %55 = vector.load %arg11[%c0_34, %c0_35] : memref<128x128xbf16, #tpu.memory_space<vmem>>, vector<32x128xbf16>
    %cst_36 = arith.constant dense<0.000000e+00> : vector<16x128xf32>
    %56 = tpu.matmul %54, %55, %cst_36 {dimension_numbers = #tpu.dot_dimension_numbers<[1], [0], [0], [1], [0, 0, 1, 1], [], []>} : vector<16x32xbf16>, vector<32x128xbf16>, vector<16x128xf32> -> vector<16x128xf32>
    %57 = arith.addf %34, %56 : vector<16x128xf32>
    %58 = vector.extract_strided_slice %24 {offsets = [0, 32], sizes = [16, 32], strides = [1, 1]} : vector<16x128xbf16> to vector<16x32xbf16>
    %59 = vector.extract_strided_slice %25 {offsets = [0, 32], sizes = [16, 32], strides = [1, 1]} : vector<16x128xbf16> to vector<16x32xbf16>
    %60 = vector.extract_strided_slice %26 {offsets = [0, 32], sizes = [16, 32], strides = [1, 1]} : vector<16x128xbf16> to vector<16x32xbf16>
    %cst_37 = arith.constant dense<0.000000e+00> : vector<16x16xf32>
    %61 = tpu.matmul %58, %59, %cst_37 {dimension_numbers = #tpu.dot_dimension_numbers<[1], [1], [0], [0], [0, 0, 1, 0], [], []>} : vector<16x32xbf16>, vector<16x32xbf16>, vector<16x16xf32> -> vector<16x16xf32>
    %cst_38 = arith.constant 0.176776692 : f32
    %62 = vector.broadcast %cst_38 : f32 to vector<16x16xf32>
    %63 = arith.mulf %61, %62 : vector<16x16xf32>
    %64 = arith.addf %63, %33 : vector<16x16xf32>
    %cst_39 = arith.constant dense<0xFF800000> : vector<16xf32>
    %65 = vector.multi_reduction <maximumf>, %64, %cst_39 [1] : vector<16x16xf32> to vector<16xf32>
    %66 = vector.shape_cast %65 : vector<16xf32> to vector<16x1xf32>
    %67 = vector.broadcast %66 : vector<16x1xf32> to vector<16x16xf32>
    %68 = arith.subf %64, %67 : vector<16x16xf32>
    %69 = math.exp %68 : vector<16x16xf32>
    %cst_40 = arith.constant dense<0.000000e+00> : vector<16xf32>
    %70 = vector.multi_reduction <add>, %69, %cst_40 [1] : vector<16x16xf32> to vector<16xf32>
    %71 = vector.shape_cast %70 : vector<16xf32> to vector<16x1xf32>
    %72 = tpu.reciprocal %71 {approx = true} : vector<16x1xf32> -> vector<16x1xf32>
    %73 = vector.broadcast %72 : vector<16x1xf32> to vector<16x16xf32>
    %74 = arith.mulf %69, %73 : vector<16x16xf32>
    %75 = arith.truncf %74 : vector<16x16xf32> to vector<16x16xbf16>
    %cst_41 = arith.constant dense<0.000000e+00> : vector<16x32xf32>
    %76 = tpu.matmul %75, %60, %cst_41 {dimension_numbers = #tpu.dot_dimension_numbers<[1], [0], [0], [1], [0, 0, 1, 1], [], []>} : vector<16x16xbf16>, vector<16x32xbf16>, vector<16x32xf32> -> vector<16x32xf32>
    %77 = arith.truncf %76 : vector<16x32xf32> to vector<16x32xbf16>
    %c32 = arith.constant 32 : index
    %c0_42 = arith.constant 0 : index
    %78 = vector.load %arg11[%c32, %c0_42] : memref<128x128xbf16, #tpu.memory_space<vmem>>, vector<32x128xbf16>
    %cst_43 = arith.constant dense<0.000000e+00> : vector<16x128xf32>
    %79 = tpu.matmul %77, %78, %cst_43 {dimension_numbers = #tpu.dot_dimension_numbers<[1], [0], [0], [1], [0, 0, 1, 1], [], []>} : vector<16x32xbf16>, vector<32x128xbf16>, vector<16x128xf32> -> vector<16x128xf32>
    %80 = arith.addf %57, %79 : vector<16x128xf32>
    %81 = vector.extract_strided_slice %24 {offsets = [0, 64], sizes = [16, 32], strides = [1, 1]} : vector<16x128xbf16> to vector<16x32xbf16>
    %82 = vector.extract_strided_slice %25 {offsets = [0, 64], sizes = [16, 32], strides = [1, 1]} : vector<16x128xbf16> to vector<16x32xbf16>
    %83 = vector.extract_strided_slice %26 {offsets = [0, 64], sizes = [16, 32], strides = [1, 1]} : vector<16x128xbf16> to vector<16x32xbf16>
    %cst_44 = arith.constant dense<0.000000e+00> : vector<16x16xf32>
    %84 = tpu.matmul %81, %82, %cst_44 {dimension_numbers = #tpu.dot_dimension_numbers<[1], [1], [0], [0], [0, 0, 1, 0], [], []>} : vector<16x32xbf16>, vector<16x32xbf16>, vector<16x16xf32> -> vector<16x16xf32>
    %cst_45 = arith.constant 0.176776692 : f32
    %85 = vector.broadcast %cst_45 : f32 to vector<16x16xf32>
    %86 = arith.mulf %84, %85 : vector<16x16xf32>
    %87 = arith.addf %86, %33 : vector<16x16xf32>
    %cst_46 = arith.constant dense<0xFF800000> : vector<16xf32>
    %88 = vector.multi_reduction <maximumf>, %87, %cst_46 [1] : vector<16x16xf32> to vector<16xf32>
    %89 = vector.shape_cast %88 : vector<16xf32> to vector<16x1xf32>
    %90 = vector.broadcast %89 : vector<16x1xf32> to vector<16x16xf32>
    %91 = arith.subf %87, %90 : vector<16x16xf32>
    %92 = math.exp %91 : vector<16x16xf32>
    %cst_47 = arith.constant dense<0.000000e+00> : vector<16xf32>
    %93 = vector.multi_reduction <add>, %92, %cst_47 [1] : vector<16x16xf32> to vector<16xf32>
    %94 = vector.shape_cast %93 : vector<16xf32> to vector<16x1xf32>
    %95 = tpu.reciprocal %94 {approx = true} : vector<16x1xf32> -> vector<16x1xf32>
    %96 = vector.broadcast %95 : vector<16x1xf32> to vector<16x16xf32>
    %97 = arith.mulf %92, %96 : vector<16x16xf32>
    %98 = arith.truncf %97 : vector<16x16xf32> to vector<16x16xbf16>
    %cst_48 = arith.constant dense<0.000000e+00> : vector<16x32xf32>
    %99 = tpu.matmul %98, %83, %cst_48 {dimension_numbers = #tpu.dot_dimension_numbers<[1], [0], [0], [1], [0, 0, 1, 1], [], []>} : vector<16x16xbf16>, vector<16x32xbf16>, vector<16x32xf32> -> vector<16x32xf32>
    %100 = arith.truncf %99 : vector<16x32xf32> to vector<16x32xbf16>
    %c64 = arith.constant 64 : index
    %c0_49 = arith.constant 0 : index
    %101 = vector.load %arg11[%c64, %c0_49] : memref<128x128xbf16, #tpu.memory_space<vmem>>, vector<32x128xbf16>
    %cst_50 = arith.constant dense<0.000000e+00> : vector<16x128xf32>
    %102 = tpu.matmul %100, %101, %cst_50 {dimension_numbers = #tpu.dot_dimension_numbers<[1], [0], [0], [1], [0, 0, 1, 1], [], []>} : vector<16x32xbf16>, vector<32x128xbf16>, vector<16x128xf32> -> vector<16x128xf32>
    %103 = arith.addf %80, %102 : vector<16x128xf32>
    %104 = vector.extract_strided_slice %24 {offsets = [0, 96], sizes = [16, 32], strides = [1, 1]} : vector<16x128xbf16> to vector<16x32xbf16>
    %105 = vector.extract_strided_slice %25 {offsets = [0, 96], sizes = [16, 32], strides = [1, 1]} : vector<16x128xbf16> to vector<16x32xbf16>
    %106 = vector.extract_strided_slice %26 {offsets = [0, 96], sizes = [16, 32], strides = [1, 1]} : vector<16x128xbf16> to vector<16x32xbf16>
    %cst_51 = arith.constant dense<0.000000e+00> : vector<16x16xf32>
    %107 = tpu.matmul %104, %105, %cst_51 {dimension_numbers = #tpu.dot_dimension_numbers<[1], [1], [0], [0], [0, 0, 1, 0], [], []>} : vector<16x32xbf16>, vector<16x32xbf16>, vector<16x16xf32> -> vector<16x16xf32>
    %cst_52 = arith.constant 0.176776692 : f32
    %108 = vector.broadcast %cst_52 : f32 to vector<16x16xf32>
    %109 = arith.mulf %107, %108 : vector<16x16xf32>
    %110 = arith.addf %109, %33 : vector<16x16xf32>
    %cst_53 = arith.constant dense<0xFF800000> : vector<16xf32>
    %111 = vector.multi_reduction <maximumf>, %110, %cst_53 [1] : vector<16x16xf32> to vector<16xf32>
    %112 = vector.shape_cast %111 : vector<16xf32> to vector<16x1xf32>
    %113 = vector.broadcast %112 : vector<16x1xf32> to vector<16x16xf32>
    %114 = arith.subf %110, %113 : vector<16x16xf32>
    %115 = math.exp %114 : vector<16x16xf32>
    %cst_54 = arith.constant dense<0.000000e+00> : vector<16xf32>
    %116 = vector.multi_reduction <add>, %115, %cst_54 [1] : vector<16x16xf32> to vector<16xf32>
    %117 = vector.shape_cast %116 : vector<16xf32> to vector<16x1xf32>
    %118 = tpu.reciprocal %117 {approx = true} : vector<16x1xf32> -> vector<16x1xf32>
    %119 = vector.broadcast %118 : vector<16x1xf32> to vector<16x16xf32>
    %120 = arith.mulf %115, %119 : vector<16x16xf32>
    %121 = arith.truncf %120 : vector<16x16xf32> to vector<16x16xbf16>
    %cst_55 = arith.constant dense<0.000000e+00> : vector<16x32xf32>
    %122 = tpu.matmul %121, %106, %cst_55 {dimension_numbers = #tpu.dot_dimension_numbers<[1], [0], [0], [1], [0, 0, 1, 1], [], []>} : vector<16x16xbf16>, vector<16x32xbf16>, vector<16x32xf32> -> vector<16x32xf32>
    %123 = arith.truncf %122 : vector<16x32xf32> to vector<16x32xbf16>
    %c96 = arith.constant 96 : index
    %c0_56 = arith.constant 0 : index
    %124 = vector.load %arg11[%c96, %c0_56] : memref<128x128xbf16, #tpu.memory_space<vmem>>, vector<32x128xbf16>
    %cst_57 = arith.constant dense<0.000000e+00> : vector<16x128xf32>
    %125 = tpu.matmul %123, %124, %cst_57 {dimension_numbers = #tpu.dot_dimension_numbers<[1], [0], [0], [1], [0, 0, 1, 1], [], []>} : vector<16x32xbf16>, vector<32x128xbf16>, vector<16x128xf32> -> vector<16x128xf32>
    %126 = arith.addf %103, %125 : vector<16x128xf32>
    %c0_58 = arith.constant 0 : index
    %c0_59 = arith.constant 0 : index
    %127 = vector.load %arg12[%c0_58, %c0_59] : memref<1x128xf32, #tpu.memory_space<vmem>>, vector<1x128xf32>
    %128 = vector.broadcast %127 : vector<1x128xf32> to vector<16x128xf32>
    %129 = arith.addf %126, %128 : vector<16x128xf32>
    %c0_60 = arith.constant 0 : index
    %c0_61 = arith.constant 0 : index
    %c0_62 = arith.constant 0 : index
    %130 = vector.load %arg13[%c0_60, %c0_61, %c0_62] : memref<1x16x128xf32, #tpu.memory_space<vmem>>, vector<1x16x128xf32>
    %131 = vector.shape_cast %130 : vector<1x16x128xf32> to vector<16x128xf32>
    %132 = vector.shape_cast %129 : vector<16x128xf32> to vector<1x16x128xf32>
    tpu.vector_store %arg13[%c0_60, %c0_61, %c0_62], %132 {strides = array<i32>} : memref<1x16x128xf32, #tpu.memory_space<vmem>>, vector<1x16x128xf32>,
    return
  }
  func.func @transform_0(%arg0: i32) -> (i32, i32, i32) {
    %c0_i32 = arith.constant 0 : i32
    %c0_i32_0 = arith.constant 0 : i32
    %c0_i32_1 = arith.constant 0 : i32
    return %arg0, %c0_i32, %c0_i32_0 : i32, i32, i32
  }
  func.func @transform_1(%arg0: i32) -> (i32, i32, i32) {
    %c0_i32 = arith.constant 0 : i32
    %c0_i32_0 = arith.constant 0 : i32
    %c0_i32_1 = arith.constant 0 : i32
    return %arg0, %c0_i32, %c0_i32_0 : i32, i32, i32
  }
  func.func @transform_2(%arg0: i32) -> (i32, i32, i32) {
    %c0_i32 = arith.constant 0 : i32
    %c0_i32_0 = arith.constant 0 : i32
    %c0_i32_1 = arith.constant 0 : i32
    return %arg0, %c0_i32, %c0_i32_0 : i32, i32, i32
  }
  func.func @transform_3(%arg0: i32) -> (i32, i32, i32) {
    %c0_i32 = arith.constant 0 : i32
    %c0_i32_0 = arith.constant 0 : i32
    %c0_i32_1 = arith.constant 0 : i32
    return %arg0, %c0_i32, %c0_i32_0 : i32, i32, i32
  }
  func.func @transform_4(%arg0: i32) -> (i32, i32) {
    %c0_i32 = arith.constant 0 : i32
    %c0_i32_0 = arith.constant 0 : i32
    %c0_i32_1 = arith.constant 0 : i32
    return %c0_i32, %c0_i32_0 : i32, i32
  }
  func.func @transform_5(%arg0: i32) -> (i32, i32) {
    %c0_i32 = arith.constant 0 : i32
    %c0_i32_0 = arith.constant 0 : i32
    %c0_i32_1 = arith.constant 0 : i32
    return %c0_i32, %c0_i32_0 : i32, i32
  }
  func.func @transform_6(%arg0: i32) -> (i32, i32) {
    %c0_i32 = arith.constant 0 : i32
    %c0_i32_0 = arith.constant 0 : i32
    %c0_i32_1 = arith.constant 0 : i32
    return %c0_i32, %c0_i32_0 : i32, i32
  }
  func.func @transform_7(%arg0: i32) -> (i32, i32) {
    %c0_i32 = arith.constant 0 : i32
    %c0_i32_0 = arith.constant 0 : i32
    %c0_i32_1 = arith.constant 0 : i32
    return %c0_i32, %c0_i32_0 : i32, i32
  }
  func.func @transform_8(%arg0: i32) -> (i32, i32) {
    %c0_i32 = arith.constant 0 : i32
    %c0_i32_0 = arith.constant 0 : i32
    %c0_i32_1 = arith.constant 0 : i32
    return %c0_i32, %c0_i32_0 : i32, i32
  }
  func.func @transform_9(%arg0: i32) -> (i32, i32) {
    %c0_i32 = arith.constant 0 : i32
    %c0_i32_0 = arith.constant 0 : i32
    %c0_i32_1 = arith.constant 0 : i32
    return %c0_i32, %c0_i32_0 : i32, i32
  }
  func.func @transform_10(%arg0: i32) -> (i32, i32) {
    %c0_i32 = arith.constant 0 : i32
    %c0_i32_0 = arith.constant 0 : i32
    %c0_i32_1 = arith.constant 0 : i32
    return %c0_i32, %c0_i32_0 : i32, i32
  }
  func.func @transform_11(%arg0: i32) -> (i32, i32) {
    %c0_i32 = arith.constant 0 : i32
    %c0_i32_0 = arith.constant 0 : i32
    %c0_i32_1 = arith.constant 0 : i32
    return %c0_i32, %c0_i32_0 : i32, i32
  }
  func.func @transform_12(%arg0: i32) -> (i32, i32, i32) {
    %c0_i32 = arith.constant 0 : i32
    %c0_i32_0 = arith.constant 0 : i32
    %c0_i32_1 = arith.constant 0 : i32
    return %arg0, %c0_i32, %c0_i32_0 : i32, i32, i32
  }
}

</mosaic_0001>

<llo_original>
// kernel: tpu_custom_call.1
$region0: #{tpu_custom_call.1}
  #allocation0 [shape = 'u32[]', space=smem, size = 0x4, offset = 0x4, fixed_abs, tag = 'smem constant byte address 0x4 - core index']
  #allocation1 [shape = 'u32[72,128]{1,0:T(1,128)}', space=vmem, size = 0x9000, scoped, tag = 'internal scratch']
  %s0 = inlined_call_operand.hbm [shape: f32[2,16,128], index: 0, kind: input, shape index: {}]
  %s1 = inlined_call_operand.hbm [shape: f32[2,16,128], index: 1, kind: input, shape index: {}]
  %s2 = inlined_call_operand.hbm [shape: f32[2,16,128], index: 2, kind: input, shape index: {}]
  %s3 = inlined_call_operand.hbm [shape: f32[2,16,16], index: 3, kind: input, shape index: {}]
  %s4 = inlined_call_operand.hbm [shape: bf16[128,128], index: 4, kind: input, shape index: {}]
  %s5 = inlined_call_operand.vmem [shape: f32[1,128], index: 5, kind: input, shape index: {}]
  %s6 = inlined_call_operand.hbm [shape: bf16[128,128], index: 6, kind: input, shape index: {}]
  %s7 = inlined_call_operand.vmem [shape: f32[1,128], index: 7, kind: input, shape index: {}]
  %s8 = inlined_call_operand.hbm [shape: bf16[128,128], index: 8, kind: input, shape index: {}]
  %s9 = inlined_call_operand.vmem [shape: f32[1,128], index: 9, kind: input, shape index: {}]
  %s10 = inlined_call_operand.hbm [shape: bf16[128,128], index: 10, kind: input, shape index: {}]
  %s11 = inlined_call_operand.vmem [shape: f32[1,128], index: 11, kind: input, shape index: {}]
  %s12 = inlined_call_operand.hbm [shape: f32[2,16,128], index: 12, kind: output, shape index: {}]
  %s13 = sld [smem:[#allocation0]]
  $region113: #{tpu_custom_call.1} parent=0
    _
  %s15 = ssub.s32 1, %s13
  %s16 = scalar_select 0, %s15, %s13
  $region1: #{tpu_custom_call.1} parent=0
    #allocation2 [shape = 'u8[16384]{0}', space=vmem, size = 0x4000, scoped, tag = 'input window, operand 0']
    #allocation3 [shape = 's32[2]{0}', space=sflag, size = 0x8, scoped, tag = 'scoped memory for tpu_custom_call.1']
    #allocation4 [shape = 's32[2]{0}', space=sflag, size = 0x8, scoped, tag = 'scoped memory for tpu_custom_call.1']
    #allocation5 [shape = 'u8[16384]{0}', space=vmem, size = 0x4000, scoped, tag = 'input window, operand 1']
    #allocation6 [shape = 's32[2]{0}', space=sflag, size = 0x8, scoped, tag = 'scoped memory for tpu_custom_call.1']
    #allocation7 [shape = 'u8[16384]{0}', space=vmem, size = 0x4000, scoped, tag = 'input window, operand 2']
    #allocation8 [shape = 'u8[16384]{0}', space=vmem, size = 0x4000, scoped, tag = 'input window, operand 3']
    #allocation9 [shape = 's32[2]{0}', space=sflag, size = 0x8, scoped, tag = 'scoped memory for tpu_custom_call.1']
    #allocation10 [shape = 'u8[32768]{0}', space=vmem, size = 0x8000, scoped, tag = 'input window, operand 4, single buffered']
    #allocation11 [shape = 'u8[32768]{0}', space=vmem, size = 0x8000, scoped, tag = 'input window, operand 6, single buffered']
    #allocation12 [shape = 's32[1]{0}', space=sflag, size = 0x4, scoped, tag = 'scoped memory for tpu_custom_call.1']
    #allocation13 [shape = 'u8[32768]{0}', space=vmem, size = 0x8000, scoped, tag = 'input window, operand 8, single buffered']
    #allocation14 [shape = 'u8[32768]{0}', space=vmem, size = 0x8000, scoped, tag = 'input window, operand 10, single buffered']
    #allocation15 [shape = 's32[1]{0}', space=sflag, size = 0x4, scoped, tag = 'scoped memory for tpu_custom_call.1']
    #allocation16 [shape = 'u8[16384]{0}', space=vmem, size = 0x4000, scoped, tag = 'output window, operand 0']
    %17 = vsyncpa [#allocation3], 0
    %s18 = scalar_lea.sflag [#allocation3], 1
    %19 = vsyncpa %s18, 0
    %20 = vsyncpa [#allocation6], 0
    %s21 = scalar_lea.sflag [#allocation6], 1
    %22 = vsyncpa %s21, 0
    %23 = vsyncpa [#allocation9], 0
    %s24 = scalar_lea.sflag [#allocation9], 1
    %25 = vsyncpa %s24, 0
    %26 = vsyncpa [#allocation12], 0
    %27 = vsyncpa [#allocation15], 0
    %28 = vsyncpa [#allocation4], 0
    %s29 = scalar_lea.sflag [#allocation4], 1
    %30 = vsyncpa %s29, 0
    loop: start=0, step=1, limit=4
    $region2: #{tpu_custom_call.1} parent=1 // loop_pre_header
      _
    $region3: #{tpu_custom_call.1} parent=1 // loop_header
      %s32 = sphi 0, %s36
      %p33 = scmp.ge.s32.totalorder %s32, 4
      %s42 = sphi 0, %s44
      %s45 = sphi 0, %s42
      %s46 = sphi 0, %s45
      %s62 = sphi 0, %s46
      %s68 = sphi 0, %s70
      %s71 = sphi 0, %s68
      %s72 = sphi 0, %s71
      %s88 = sphi 0, %s72
      %s94 = sphi 0, %s96
      %s97 = sphi 0, %s94
      %s98 = sphi 0, %s97
      %s114 = sphi 0, %s98
      %s120 = sphi 0, %s122
      %s123 = sphi 0, %s120
      %s124 = sphi 0, %s123
      %s140 = sphi 0, %s124
      %s144 = sphi 0, %s144
      %s146 = sphi 0, %s144
      %s147 = sphi 0, %s146
      %s161 = sphi 0, %s147
      %s165 = sphi 0, %s165
      %s167 = sphi 0, %s165
      %s168 = sphi 0, %s167
      %s182 = sphi 0, %s168
      %s186 = sphi 0, %s186
      %s188 = sphi 0, %s186
      %s189 = sphi 0, %s188
      %s203 = sphi 0, %s189
      %s207 = sphi 0, %s207
      %s209 = sphi 0, %s207
      %s210 = sphi 0, %s209
      %s224 = sphi 0, %s210
      %s228 = sphi 0, %s228
      %s230 = sphi 0, %s228
      %s231 = sphi 0, %s230
      %s245 = sphi 0, %s231
      %s249 = sphi 0, %s249
      %s251 = sphi 0, %s249
      %s252 = sphi 0, %s251
      %s266 = sphi 0, %s252
      %s270 = sphi 0, %s270
      %s272 = sphi 0, %s270
      %s273 = sphi 0, %s272
      %s287 = sphi 0, %s273
      %s291 = sphi 0, %s291
      %s293 = sphi 0, %s291
      %s294 = sphi 0, %s293
      %s308 = sphi 0, %s294
      %s314 = sphi 0, %s316
      %s317 = sphi 0, %s314
      %s318 = sphi 0, %s317
      %s334 = sphi 0, %s318
    $region4: #{tpu_custom_call.1} parent=1 // loop_header_branch
      %35 = sbr.rel (%p33) target = $region8
    $region5: #{tpu_custom_call.1} parent=1 // loop_body
      %s37 = ssub.s32 %s32, 1
      %s38 = ssub.s32 %s32, 2
      %s39 = sadd.s32 %s32, 1
      %s40 = ssub.s32 %s32, %s39
      %p41 = scmp.eq.s32.totalorder %s40, 0
      %s43 = sadd.s32 %s42, 1
      %s44 = scalar_select %p41, %s42, %s43
      %p47 = pneg %p41
      %p48 = scmp.eq.s32.totalorder %s32, 1
      %p49 = por %p47, %p48
      %p50 = scmp.ne.s32.totalorder %s42, %s45
      %p51 = scmp.eq.s32.totalorder %s32, 0
      %p52 = por %p50, %p51
      %p53 = scmp.ne.s32.totalorder %s42, %s45
      %p54 = scmp.eq.s32.totalorder %s37, 1
      %p55 = por %p53, %p54
      %p56 = scmp.ne.s32.totalorder %s45, %s46
      %p57 = scmp.eq.s32.totalorder %s37, 0
      %p58 = por %p56, %p57
      %p59 = scmp.ne.s32.totalorder %s45, %s46
      %p60 = scmp.eq.s32.totalorder %s38, 1
      %p61 = por %p59, %p60
      %p63 = scmp.ne.s32.totalorder %s46, %s62
      %p64 = scmp.eq.s32.totalorder %s38, 0
      %p65 = por %p63, %p64
      %s66 = ssub.s32 %s32, %s39
      %p67 = scmp.eq.s32.totalorder %s66, 0
      %s69 = sadd.s32 %s68, 1
      %s70 = scalar_select %p67, %s68, %s69
      %p73 = pneg %p67
      %p74 = scmp.eq.s32.totalorder %s32, 1
      %p75 = por %p73, %p74
      %p76 = scmp.ne.s32.totalorder %s68, %s71
      %p77 = scmp.eq.s32.totalorder %s32, 0
      %p78 = por %p76, %p77
      %p79 = scmp.ne.s32.totalorder %s68, %s71
      %p80 = scmp.eq.s32.totalorder %s37, 1
      %p81 = por %p79, %p80
      %p82 = scmp.ne.s32.totalorder %s71, %s72
      %p83 = scmp.eq.s32.totalorder %s37, 0
      %p84 = por %p82, %p83
      %p85 = scmp.ne.s32.totalorder %s71, %s72
      %p86 = scmp.eq.s32.totalorder %s38, 1
      %p87 = por %p85, %p86
      %p89 = scmp.ne.s32.totalorder %s72, %s88
      %p90 = scmp.eq.s32.totalorder %s38, 0
      %p91 = por %p89, %p90
      %s92 = ssub.s32 %s32, %s39
      %p93 = scmp.eq.s32.totalorder %s92, 0
      %s95 = sadd.s32 %s94, 1
      %s96 = scalar_select %p93, %s94, %s95
      %p99 = pneg %p93
      %p100 = scmp.eq.s32.totalorder %s32, 1
      %p101 = por %p99, %p100
      %p102 = scmp.ne.s32.totalorder %s94, %s97
      %p103 = scmp.eq.s32.totalorder %s32, 0
      %p104 = por %p102, %p103
      %p105 = scmp.ne.s32.totalorder %s94, %s97
      %p106 = scmp.eq.s32.totalorder %s37, 1
      %p107 = por %p105, %p106
      %p108 = scmp.ne.s32.totalorder %s97, %s98
      %p109 = scmp.eq.s32.totalorder %s37, 0
      %p110 = por %p108, %p109
      %p111 = scmp.ne.s32.totalorder %s97, %s98
      %p112 = scmp.eq.s32.totalorder %s38, 1
      %p113 = por %p111, %p112
      %p115 = scmp.ne.s32.totalorder %s98, %s114
      %p116 = scmp.eq.s32.totalorder %s38, 0
      %p117 = por %p115, %p116
      %s118 = ssub.s32 %s32, %s39
      %p119 = scmp.eq.s32.totalorder %s118, 0
      %s121 = sadd.s32 %s120, 1
      %s122 = scalar_select %p119, %s120, %s121
      %p125 = pneg %p119
      %p126 = scmp.eq.s32.totalorder %s32, 1
      %p127 = por %p125, %p126
      %p128 = scmp.ne.s32.totalorder %s120, %s123
      %p129 = scmp.eq.s32.totalorder %s32, 0
      %p130 = por %p128, %p129
      %p131 = scmp.ne.s32.totalorder %s120, %s123
      %p132 = scmp.eq.s32.totalorder %s37, 1
      %p133 = por %p131, %p132
      %p134 = scmp.ne.s32.totalorder %s123, %s124
      %p135 = scmp.eq.s32.totalorder %s37, 0
      %p136 = por %p134, %p135
      %p137 = scmp.ne.s32.totalorder %s123, %s124
      %p138 = scmp.eq.s32.totalorder %s38, 1
      %p139 = por %p137, %p138
      %p141 = scmp.ne.s32.totalorder %s124, %s140
      %p142 = scmp.eq.s32.totalorder %s38, 0
      %p143 = por %p141, %p142
      %s145 = sadd.s32 %s144, 1
      %p148 = scmp.eq.s32.totalorder %s32, 1
      %p149 = scmp.ne.s32.totalorder %s144, %s146
      %p150 = scmp.eq.s32.totalorder %s32, 0
      %p151 = por %p149, %p150
      %p152 = scmp.ne.s32.totalorder %s144, %s146
      %p153 = scmp.eq.s32.totalorder %s37, 1
      %p154 = por %p152, %p153
      %p155 = scmp.ne.s32.totalorder %s146, %s147
      %p156 = scmp.eq.s32.totalorder %s37, 0
      %p157 = por %p155, %p156
      %p158 = scmp.ne.s32.totalorder %s146, %s147
      %p159 = scmp.eq.s32.totalorder %s38, 1
      %p160 = por %p158, %p159
      %p162 = scmp.ne.s32.totalorder %s147, %s161
      %p163 = scmp.eq.s32.totalorder %s38, 0
      %p164 = por %p162, %p163
      %s166 = sadd.s32 %s165, 1
      %p169 = scmp.eq.s32.totalorder %s32, 1
      %p170 = scmp.ne.s32.totalorder %s165, %s167
      %p171 = scmp.eq.s32.totalorder %s32, 0
      %p172 = por %p170, %p171
      %p173 = scmp.ne.s32.totalorder %s165, %s167
      %p174 = scmp.eq.s32.totalorder %s37, 1
      %p175 = por %p173, %p174
      %p176 = scmp.ne.s32.totalorder %s167, %s168
      %p177 = scmp.eq.s32.totalorder %s37, 0
      %p178 = por %p176, %p177
      %p179 = scmp.ne.s32.totalorder %s167, %s168
      %p180 = scmp.eq.s32.totalorder %s38, 1
      %p181 = por %p179, %p180
      %p183 = scmp.ne.s32.totalorder %s168, %s182
      %p184 = scmp.eq.s32.totalorder %s38, 0
      %p185 = por %p183, %p184
      %s187 = sadd.s32 %s186, 1
      %p190 = scmp.eq.s32.totalorder %s32, 1
      %p191 = scmp.ne.s32.totalorder %s186, %s188
      %p192 = scmp.eq.s32.totalorder %s32, 0
      %p193 = por %p191, %p192
      %p194 = scmp.ne.s32.totalorder %s186, %s188
      %p195 = scmp.eq.s32.totalorder %s37, 1
      %p196 = por %p194, %p195
      %p197 = scmp.ne.s32.totalorder %s188, %s189
      %p198 = scmp.eq.s32.totalorder %s37, 0
      %p199 = por %p197, %p198
      %p200 = scmp.ne.s32.totalorder %s188, %s189
      %p201 = scmp.eq.s32.totalorder %s38, 1
      %p202 = por %p200, %p201
      %p204 = scmp.ne.s32.totalorder %s189, %s203
      %p205 = scmp.eq.s32.totalorder %s38, 0
      %p206 = por %p204, %p205
      %s208 = sadd.s32 %s207, 1
      %p211 = scmp.eq.s32.totalorder %s32, 1
      %p212 = scmp.ne.s32.totalorder %s207, %s209
      %p213 = scmp.eq.s32.totalorder %s32, 0
      %p214 = por %p212, %p213
      %p215 = scmp.ne.s32.totalorder %s207, %s209
      %p216 = scmp.eq.s32.totalorder %s37, 1
      %p217 = por %p215, %p216
      %p218 = scmp.ne.s32.totalorder %s209, %s210
      %p219 = scmp.eq.s32.totalorder %s37, 0
      %p220 = por %p218, %p219
      %p221 = scmp.ne.s32.totalorder %s209, %s210
      %p222 = scmp.eq.s32.totalorder %s38, 1
      %p223 = por %p221, %p222
      %p225 = scmp.ne.s32.totalorder %s210, %s224
      %p226 = scmp.eq.s32.totalorder %s38, 0
      %p227 = por %p225, %p226
      %s229 = sadd.s32 %s228, 1
      %p232 = scmp.eq.s32.totalorder %s32, 1
      %p233 = scmp.ne.s32.totalorder %s228, %s230
      %p234 = scmp.eq.s32.totalorder %s32, 0
      %p235 = por %p233, %p234
      %p236 = scmp.ne.s32.totalorder %s228, %s230
      %p237 = scmp.eq.s32.totalorder %s37, 1
      %p238 = por %p236, %p237
      %p239 = scmp.ne.s32.totalorder %s230, %s231
      %p240 = scmp.eq.s32.totalorder %s37, 0
      %p241 = por %p239, %p240
      %p242 = scmp.ne.s32.totalorder %s230, %s231
      %p243 = scmp.eq.s32.totalorder %s38, 1
      %p244 = por %p242, %p243
      %p246 = scmp.ne.s32.totalorder %s231, %s245
      %p247 = scmp.eq.s32.totalorder %s38, 0
      %p248 = por %p246, %p247
      %s250 = sadd.s32 %s249, 1
      %p253 = scmp.eq.s32.totalorder %s32, 1
      %p254 = scmp.ne.s32.totalorder %s249, %s251
      %p255 = scmp.eq.s32.totalorder %s32, 0
      %p256 = por %p254, %p255
      %p257 = scmp.ne.s32.totalorder %s249, %s251
      %p258 = scmp.eq.s32.totalorder %s37, 1
      %p259 = por %p257, %p258
      %p260 = scmp.ne.s32.totalorder %s251, %s252
      %p261 = scmp.eq.s32.totalorder %s37, 0
      %p262 = por %p260, %p261
      %p263 = scmp.ne.s32.totalorder %s251, %s252
      %p264 = scmp.eq.s32.totalorder %s38, 1
      %p265 = por %p263, %p264
      %p267 = scmp.ne.s32.totalorder %s252, %s266
      %p268 = scmp.eq.s32.totalorder %s38, 0
      %p269 = por %p267, %p268
      %s271 = sadd.s32 %s270, 1
      %p274 = scmp.eq.s32.totalorder %s32, 1
      %p275 = scmp.ne.s32.totalorder %s270, %s272
      %p276 = scmp.eq.s32.totalorder %s32, 0
      %p277 = por %p275, %p276
      %p278 = scmp.ne.s32.totalorder %s270, %s272
      %p279 = scmp.eq.s32.totalorder %s37, 1
      %p280 = por %p278, %p279
      %p281 = scmp.ne.s32.totalorder %s272, %s273
      %p282 = scmp.eq.s32.totalorder %s37, 0
      %p283 = por %p281, %p282
      %p284 = scmp.ne.s32.totalorder %s272, %s273
      %p285 = scmp.eq.s32.totalorder %s38, 1
      %p286 = por %p284, %p285
      %p288 = scmp.ne.s32.totalorder %s273, %s287
      %p289 = scmp.eq.s32.totalorder %s38, 0
      %p290 = por %p288, %p289
      %s292 = sadd.s32 %s291, 1
      %p295 = scmp.eq.s32.totalorder %s32, 1
      %p296 = scmp.ne.s32.totalorder %s291, %s293
      %p297 = scmp.eq.s32.totalorder %s32, 0
      %p298 = por %p296, %p297
      %p299 = scmp.ne.s32.totalorder %s291, %s293
      %p300 = scmp.eq.s32.totalorder %s37, 1
      %p301 = por %p299, %p300
      %p302 = scmp.ne.s32.totalorder %s293, %s294
      %p303 = scmp.eq.s32.totalorder %s37, 0
      %p304 = por %p302, %p303
      %p305 = scmp.ne.s32.totalorder %s293, %s294
      %p306 = scmp.eq.s32.totalorder %s38, 1
      %p307 = por %p305, %p306
      %p309 = scmp.ne.s32.totalorder %s294, %s308
      %p310 = scmp.eq.s32.totalorder %s38, 0
      %p311 = por %p309, %p310
      %s312 = ssub.s32 %s32, %s39
      %p313 = scmp.eq.s32.totalorder %s312, 0
      %s315 = sadd.s32 %s314, 1
      %s316 = scalar_select %p313, %s314, %s315
      %p319 = pneg %p313
      %p320 = scmp.eq.s32.totalorder %s32, 1
      %p321 = por %p319, %p320
      %p322 = scmp.ne.s32.totalorder %s314, %s317
      %p323 = scmp.eq.s32.totalorder %s32, 0
      %p324 = por %p322, %p323
      %p325 = scmp.ne.s32.totalorder %s314, %s317
      %p326 = scmp.eq.s32.totalorder %s37, 1
      %p327 = por %p325, %p326
      %p328 = scmp.ne.s32.totalorder %s317, %s318
      %p329 = scmp.eq.s32.totalorder %s37, 0
      %p330 = por %p328, %p329
      %p331 = scmp.ne.s32.totalorder %s317, %s318
      %p332 = scmp.eq.s32.totalorder %s38, 1
      %p333 = por %p331, %p332
      %p335 = scmp.ne.s32.totalorder %s318, %s334
      %p336 = scmp.eq.s32.totalorder %s38, 0
      %p337 = por %p335, %p336
      %p338 = scmp.le.s32.totalorder 1, %s32
      %p339 = scmp.lt.s32.totalorder %s32, 3
      %p340 = pnand %p338, %p339
      %p341 = pneg %p340
      // Predicated region
      $region9: #{tpu_custom_call.1} parent=5 // pred_check
        _
      $region10: #{tpu_custom_call.1} parent=5 // pred_check_branch
        %343 = sbr.rel (%p340) target = $region12
      $region11: #{tpu_custom_call.1} parent=5 // pred_region
        %s344 = ssub.s32 %s32, 1
        // Predicated region
        $region13: #{tpu_custom_call.1} parent=11 // pred_check
          %p345 = pneg %p157
        $region14: #{tpu_custom_call.1} parent=11 // pred_check_branch
          %347 = sbr.rel (%p345) target = $region16
        $region15: #{tpu_custom_call.1} parent=11 // pred_region
          %349 = vsyncadd [#allocation9], 0
          %s350 = sshll.u32 %s4, 4
          %s351 = int_to_ptr.hbm [resolvable:$true] %s350
          %s352 = sshll.u32 [#allocation10], 4
          %s353 = int_to_ptr.vmem [resolvable:$true] %s352
          %358 = dma.hbm_to_vmem [thread:$0]  %s351, 1024, %s353, [#allocation9], 64, 64, 4
        $region16: #{tpu_custom_call.1} parent=11 // pred_fallthru
          _
        // Predicated region
        $region17: #{tpu_custom_call.1} parent=11 // pred_check
          %p359 = pneg %p178
        $region18: #{tpu_custom_call.1} parent=11 // pred_check_branch
          %361 = sbr.rel (%p359) target = $region20
        $region19: #{tpu_custom_call.1} parent=11 // pred_region
          _
        $region20: #{tpu_custom_call.1} parent=11 // pred_fallthru
          _
        // Predicated region
        $region21: #{tpu_custom_call.1} parent=11 // pred_check
          %p362 = pneg %p199
        $region22: #{tpu_custom_call.1} parent=11 // pred_check_branch
          %364 = sbr.rel (%p362) target = $region24
        $region23: #{tpu_custom_call.1} parent=11 // pred_region
          %366 = vsyncadd [#allocation12], 0
          %s367 = sshll.u32 %s6, 4
          %s368 = int_to_ptr.hbm [resolvable:$true] %s367
          %s369 = sshll.u32 [#allocation11], 4
          %s370 = int_to_ptr.vmem [resolvable:$true] %s369
          %375 = dma.hbm_to_vmem [thread:$0]  %s368, 1024, %s370, [#allocation12], 64, 64, 4
        $region24: #{tpu_custom_call.1} parent=11 // pred_fallthru
          _
        // Predicated region
        $region25: #{tpu_custom_call.1} parent=11 // pred_check
          %p376 = pneg %p220
        $region26: #{tpu_custom_call.1} parent=11 // pred_check_branch
          %378 = sbr.rel (%p376) target = $region28
        $region27: #{tpu_custom_call.1} parent=11 // pred_region
          _
        $region28: #{tpu_custom_call.1} parent=11 // pred_fallthru
          _
        // Predicated region
        $region29: #{tpu_custom_call.1} parent=11 // pred_check
          %p379 = pneg %p241
        $region30: #{tpu_custom_call.1} parent=11 // pred_check_branch
          %381 = sbr.rel (%p379) target = $region32
        $region31: #{tpu_custom_call.1} parent=11 // pred_region
          %383 = vsyncadd [#allocation12], 0
          %s384 = sshll.u32 %s8, 4
          %s385 = int_to_ptr.hbm [resolvable:$true] %s384
          %s386 = sshll.u32 [#allocation13], 4
          %s387 = int_to_ptr.vmem [resolvable:$true] %s386
          %392 = dma.hbm_to_vmem [thread:$0]  %s385, 1024, %s387, [#allocation12], 64, 64, 4
        $region32: #{tpu_custom_call.1} parent=11 // pred_fallthru
          _
        // Predicated region
        $region33: #{tpu_custom_call.1} parent=11 // pred_check
          %p393 = pneg %p262
        $region34: #{tpu_custom_call.1} parent=11 // pred_check_branch
          %395 = sbr.rel (%p393) target = $region36
        $region35: #{tpu_custom_call.1} parent=11 // pred_region
          _
        $region36: #{tpu_custom_call.1} parent=11 // pred_fallthru
          _
        // Predicated region
        $region37: #{tpu_custom_call.1} parent=11 // pred_check
          %p396 = pneg %p283
        $region38: #{tpu_custom_call.1} parent=11 // pred_check_branch
          %398 = sbr.rel (%p396) target = $region40
        $region39: #{tpu_custom_call.1} parent=11 // pred_region
          %400 = vsyncadd [#allocation15], 0
          %s401 = sshll.u32 %s10, 4
          %s402 = int_to_ptr.hbm [resolvable:$true] %s401
          %s403 = sshll.u32 [#allocation14], 4
          %s404 = int_to_ptr.vmem [resolvable:$true] %s403
          %409 = dma.hbm_to_vmem [thread:$0]  %s402, 1024, %s404, [#allocation15], 64, 64, 4
        $region40: #{tpu_custom_call.1} parent=11 // pred_fallthru
          _
        // Predicated region
        $region41: #{tpu_custom_call.1} parent=11 // pred_check
          %p410 = pneg %p304
        $region42: #{tpu_custom_call.1} parent=11 // pred_check_branch
          %412 = sbr.rel (%p410) target = $region44
        $region43: #{tpu_custom_call.1} parent=11 // pred_region
          _
        $region44: #{tpu_custom_call.1} parent=11 // pred_fallthru
          _
      $region12: #{tpu_custom_call.1} parent=5 // pred_fallthru
        _
      %p413 = scmp.lt.s32.totalorder %s32, 2
      // Predicated region
      $region45: #{tpu_custom_call.1} parent=5 // pred_check
        %p414 = pneg %p413
      $region46: #{tpu_custom_call.1} parent=5 // pred_check_branch
        %416 = sbr.rel (%p414) target = $region48
      $region47: #{tpu_custom_call.1} parent=5 // pred_region
        // Predicated region
        $region49: #{tpu_custom_call.1} parent=47 // pred_check
          %p417 = pneg %p52
        $region50: #{tpu_custom_call.1} parent=47 // pred_check_branch
          %419 = sbr.rel (%p417) target = $region52
        $region51: #{tpu_custom_call.1} parent=47 // pred_region
          %s420 = sand.u32 %s42, 1
          %s421 = scalar_lea.sflag [#allocation3], %s420
          %s422 = sand.u32 %s42, 1
          %s423 = smul.addr %s422, 16
          %s424 = scalar_lea.vmem [#allocation2], %s423
          %426 = vsyncadd %s421, 0
          %s427 = smul.addr %s32, 2
          %s428 = smul.addr %s427, 8
          %s429 = scalar_lea.hbm %s0, %s428
          %s430 = sshll.u32 %s429, 4
          %s431 = int_to_ptr.hbm [resolvable:$true] %s430
          %s432 = sshll.u32 %s424, 4
          %s433 = int_to_ptr.vmem [resolvable:$true] %s432
          %438 = dma.hbm_to_vmem [thread:$0]  %s431, 256, %s433, %s421, 128, 128, 8
        $region52: #{tpu_custom_call.1} parent=47 // pred_fallthru
          _
        // Predicated region
        $region53: #{tpu_custom_call.1} parent=47 // pred_check
          %p439 = pneg %p78
        $region54: #{tpu_custom_call.1} parent=47 // pred_check_branch
          %441 = sbr.rel (%p439) target = $region56
        $region55: #{tpu_custom_call.1} parent=47 // pred_region
          %s442 = sand.u32 %s32, 1
          %s443 = scalar_lea.sflag [#allocation6], %s442
          %s444 = sand.u32 %s68, 1
          %s445 = smul.addr %s444, 16
          %s446 = scalar_lea.vmem [#allocation5], %s445
          %448 = vsyncadd %s443, 0
          %s449 = smul.addr %s32, 2
          %s450 = smul.addr %s449, 8
          %s451 = scalar_lea.hbm %s1, %s450
          %s452 = sshll.u32 %s451, 4
          %s453 = int_to_ptr.hbm [resolvable:$true] %s452
          %s454 = sshll.u32 %s446, 4
          %s455 = int_to_ptr.vmem [resolvable:$true] %s454
          %460 = dma.hbm_to_vmem [thread:$0]  %s453, 256, %s455, %s443, 128, 128, 8
        $region56: #{tpu_custom_call.1} parent=47 // pred_fallthru
          _
        // Predicated region
        $region57: #{tpu_custom_call.1} parent=47 // pred_check
          %p461 = pneg %p104
        $region58: #{tpu_custom_call.1} parent=47 // pred_check_branch
          %463 = sbr.rel (%p461) target = $region60
        $region59: #{tpu_custom_call.1} parent=47 // pred_region
          %s464 = sand.u32 %s32, 1
          %s465 = scalar_lea.sflag [#allocation6], %s464
          %s466 = sand.u32 %s94, 1
          %s467 = smul.addr %s466, 16
          %s468 = scalar_lea.vmem [#allocation7], %s467
          %470 = vsyncadd %s465, 0
          %s471 = smul.addr %s32, 2
          %s472 = smul.addr %s471, 8
          %s473 = scalar_lea.hbm %s2, %s472
          %s474 = sshll.u32 %s473, 4
          %s475 = int_to_ptr.hbm [resolvable:$true] %s474
          %s476 = sshll.u32 %s468, 4
          %s477 = int_to_ptr.vmem [resolvable:$true] %s476
          %482 = dma.hbm_to_vmem [thread:$0]  %s475, 256, %s477, %s465, 128, 128, 8
        $region60: #{tpu_custom_call.1} parent=47 // pred_fallthru
          _
        // Predicated region
        $region61: #{tpu_custom_call.1} parent=47 // pred_check
          %p483 = pneg %p130
        $region62: #{tpu_custom_call.1} parent=47 // pred_check_branch
          %485 = sbr.rel (%p483) target = $region64
        $region63: #{tpu_custom_call.1} parent=47 // pred_region
          %s486 = sand.u32 %s32, 1
          %s487 = scalar_lea.sflag [#allocation9], %s486
          %s488 = sand.u32 %s120, 1
          %s489 = smul.addr %s488, 16
          %s490 = scalar_lea.vmem [#allocation8], %s489
          %492 = vsyncadd %s487, 0
          %s493 = smul.addr %s32, 2
          %s494 = smul.addr %s493, 8
          %s495 = scalar_lea.hbm %s3, %s494
          %s496 = sshll.u32 %s495, 4
          %s497 = int_to_ptr.hbm [resolvable:$true] %s496
          %s498 = sshll.u32 %s490, 4
          %s499 = int_to_ptr.vmem [resolvable:$true] %s498
          %504 = dma.hbm_to_vmem [thread:$0]  %s497, 256, %s499, %s487, 128, 128, 8
        $region64: #{tpu_custom_call.1} parent=47 // pred_fallthru
          _
      $region48: #{tpu_custom_call.1} parent=5 // pred_fallthru
        _
      %p505 = scmp.le.s32.totalorder 1, %s32
      %p506 = scmp.lt.s32.totalorder %s32, 3
      %p507 = pnand %p505, %p506
      %p508 = pneg %p507
      // Predicated region
      $region65: #{tpu_custom_call.1} parent=5 // pred_check
        _
      $region66: #{tpu_custom_call.1} parent=5 // pred_check_branch
        %510 = sbr.rel (%p507) target = $region68
      $region67: #{tpu_custom_call.1} parent=5 // pred_region
        %s511 = ssub.s32 %s32, 1
        %s512 = sand.u32 %s45, 1
        %s513 = scalar_lea.sflag [#allocation3], %s512
        %s514 = sand.u32 %s45, 1
        %s515 = smul.addr %s514, 16
        %s516 = scalar_lea.vmem [#allocation2], %s515
        // Predicated region
        $region69: #{tpu_custom_call.1} parent=67 // pred_check
          %p517 = pneg %p58
        $region70: #{tpu_custom_call.1} parent=67 // pred_check_branch
          %519 = sbr.rel (%p517) target = $region72
        $region71: #{tpu_custom_call.1} parent=67 // pred_region
          %521 = dma.done %s513, 256
        $region72: #{tpu_custom_call.1} parent=67 // pred_fallthru
          _
        %s522 = sand.u32 %s37, 1
        %s523 = scalar_lea.sflag [#allocation6], %s522
        %s524 = sand.u32 %s71, 1
        %s525 = smul.addr %s524, 16
        %s526 = scalar_lea.vmem [#allocation5], %s525
        // Predicated region
        $region73: #{tpu_custom_call.1} parent=67 // pred_check
          %p527 = pneg %p84
        $region74: #{tpu_custom_call.1} parent=67 // pred_check_branch
          %529 = sbr.rel (%p527) target = $region76
        $region75: #{tpu_custom_call.1} parent=67 // pred_region
          %531 = dma.done %s523, 256
        $region76: #{tpu_custom_call.1} parent=67 // pred_fallthru
          _
        %s532 = sand.u32 %s37, 1
        %s533 = scalar_lea.sflag [#allocation6], %s532
        %s534 = sand.u32 %s97, 1
        %s535 = smul.addr %s534, 16
        %s536 = scalar_lea.vmem [#allocation7], %s535
        // Predicated region
        $region77: #{tpu_custom_call.1} parent=67 // pred_check
          %p537 = pneg %p110
        $region78: #{tpu_custom_call.1} parent=67 // pred_check_branch
          %539 = sbr.rel (%p537) target = $region80
        $region79: #{tpu_custom_call.1} parent=67 // pred_region
          %541 = dma.done %s533, 256
        $region80: #{tpu_custom_call.1} parent=67 // pred_fallthru
          _
        %s542 = sand.u32 %s37, 1
        %s543 = scalar_lea.sflag [#allocation9], %s542
        %s544 = sand.u32 %s123, 1
        %s545 = smul.addr %s544, 16
        %s546 = scalar_lea.vmem [#allocation8], %s545
        // Predicated region
        $region81: #{tpu_custom_call.1} parent=67 // pred_check
          %p547 = pneg %p136
        $region82: #{tpu_custom_call.1} parent=67 // pred_check_branch
          %549 = sbr.rel (%p547) target = $region84
        $region83: #{tpu_custom_call.1} parent=67 // pred_region
          %551 = dma.done %s543, 256
        $region84: #{tpu_custom_call.1} parent=67 // pred_fallthru
          _
        // Predicated region
        $region85: #{tpu_custom_call.1} parent=67 // pred_check
          %p552 = pneg %p157
        $region86: #{tpu_custom_call.1} parent=67 // pred_check_branch
          %554 = sbr.rel (%p552) target = $region88
        $region87: #{tpu_custom_call.1} parent=67 // pred_region
          %556 = dma.done [#allocation9], 1024
        $region88: #{tpu_custom_call.1} parent=67 // pred_fallthru
          _
        // Predicated region
        $region89: #{tpu_custom_call.1} parent=67 // pred_check
          %p557 = pneg %p199
        $region90: #{tpu_custom_call.1} parent=67 // pred_check_branch
          %559 = sbr.rel (%p557) target = $region92
        $region91: #{tpu_custom_call.1} parent=67 // pred_region
          %561 = dma.done [#allocation12], 1024
        $region92: #{tpu_custom_call.1} parent=67 // pred_fallthru
          _
        // Predicated region
        $region93: #{tpu_custom_call.1} parent=67 // pred_check
          %p562 = pneg %p241
        $region94: #{tpu_custom_call.1} parent=67 // pred_check_branch
          %564 = sbr.rel (%p562) target = $region96
        $region95: #{tpu_custom_call.1} parent=67 // pred_region
          %566 = dma.done [#allocation12], 1024
        $region96: #{tpu_custom_call.1} parent=67 // pred_fallthru
          _
        // Predicated region
        $region97: #{tpu_custom_call.1} parent=67 // pred_check
          %p567 = pneg %p283
        $region98: #{tpu_custom_call.1} parent=67 // pred_check_branch
          %569 = sbr.rel (%p567) target = $region100
        $region99: #{tpu_custom_call.1} parent=67 // pred_region
          %571 = dma.done [#allocation15], 1024
        $region100: #{tpu_custom_call.1} parent=67 // pred_fallthru
          _
        %s572 = sand.u32 %s45, 1
        %s573 = scalar_lea.sflag [#allocation3], %s572
        %s574 = sand.u32 %s45, 1
        %s575 = smul.addr %s574, 16
        %s576 = scalar_lea.vmem [#allocation2], %s575
        %p577 = pneg %p58
        %p578 = pneg %p55
        %s579 = sand.u32 %s37, 1
        %s580 = scalar_lea.sflag [#allocation6], %s579
        %s581 = sand.u32 %s71, 1
        %s582 = smul.addr %s581, 16
        %s583 = scalar_lea.vmem [#allocation5], %s582
        %p584 = pneg %p84
        %p585 = pneg %p81
        %s586 = sand.u32 %s37, 1
        %s587 = scalar_lea.sflag [#allocation6], %s586
        %s588 = sand.u32 %s97, 1
        %s589 = smul.addr %s588, 16
        %s590 = scalar_lea.vmem [#allocation7], %s589
        %p591 = pneg %p110
        %p592 = pneg %p107
        %s593 = sand.u32 %s37, 1
        %s594 = scalar_lea.sflag [#allocation9], %s593
        %s595 = sand.u32 %s123, 1
        %s596 = smul.addr %s595, 16
        %s597 = scalar_lea.vmem [#allocation8], %s596
        %p598 = pneg %p136
        %p599 = pneg %p133
        %p600 = pneg %p157
        %p601 = pneg %p154
        %p602 = pneg %p178
        %p603 = pneg %p175
        %p604 = pneg %p199
        %p605 = pneg %p196
        %p606 = pneg %p220
        %p607 = pneg %p217
        %p608 = pneg %p241
        %p609 = pneg %p238
        %p610 = pneg %p262
        %p611 = pneg %p259
        %p612 = pneg %p283
        %p613 = pneg %p280
        %p614 = pneg %p304
        %p615 = pneg %p301
        %p616 = pneg %p330
        %p617 = pneg %p327
        %s618 = sand.u32 %s317, 1
        %s619 = scalar_lea.sflag [#allocation4], %s618
        %s620 = sand.u32 %s317, 1
        %s621 = smul.addr %s620, 16
        %s622 = scalar_lea.vmem [#allocation16], %s621
        %v624 = vld [vmem:[%s516] sm:$0xff]
        %v625 = vld [vmem:[%s516 + $0x8] sm:$0xff]
        %v626 = vpack.c.bf16 %v625, %v624
        %v627 = vld [vmem:[%s526] sm:$0xff]
        %v628 = vld [vmem:[%s526 + $0x8] sm:$0xff]
        %v629 = vpack.c.bf16 %v628, %v627
        %v630 = vld [vmem:[%s536] sm:$0xff]
        %v631 = vld [vmem:[%s536 + $0x8] sm:$0xff]
        %v632 = vpack.c.bf16 %v631, %v630
        %v633 = vld [vmem:[#allocation10] sm:$0xf]
        %v634 = vld [vmem:[#allocation10 + $0x4] sm:$0xf]
        %v635 = vld [vmem:[#allocation10 + $0x8] sm:$0xf]
        %v636 = vld [vmem:[#allocation10 + $0xc] sm:$0xf]
        %v637 = vld [vmem:[#allocation10 + $0x10] sm:$0xf]
        %v638 = vld [vmem:[#allocation10 + $0x14] sm:$0xf]
        %v639 = vld [vmem:[#allocation10 + $0x18] sm:$0xf]
        %v640 = vld [vmem:[#allocation10 + $0x1c] sm:$0xf]
        %v641 = vld [vmem:[#allocation10 + $0x20] sm:$0xf]
        %v642 = vld [vmem:[#allocation10 + $0x24] sm:$0xf]
        %v643 = vld [vmem:[#allocation10 + $0x28] sm:$0xf]
        %v644 = vld [vmem:[#allocation10 + $0x2c] sm:$0xf]
        %v645 = vld [vmem:[#allocation10 + $0x30] sm:$0xf]
        %v646 = vld [vmem:[#allocation10 + $0x34] sm:$0xf]
        %v647 = vld [vmem:[#allocation10 + $0x38] sm:$0xf]
        %v648 = vld [vmem:[#allocation10 + $0x3c] sm:$0xf]
        %v649 = vld [vmem:[%s5] sm:$0x1]
        %v651 = vperm.slane %v649, 0
        %v669 = vunpack.c.l.b16 %v633
        %v670 = vunpack.c.l.b16 %v634
        %v671 = vunpack.c.l.b16 %v635
        %v672 = vunpack.c.l.b16 %v636
        %v673 = vunpack.c.l.b16 %v637
        %v674 = vunpack.c.l.b16 %v638
        %v675 = vunpack.c.l.b16 %v639
        %v676 = vunpack.c.l.b16 %v640
        %v677 = vunpack.c.l.b16 %v641
        %v678 = vunpack.c.l.b16 %v642
        %v679 = vunpack.c.l.b16 %v643
        %v680 = vunpack.c.l.b16 %v644
        %v681 = vunpack.c.l.b16 %v645
        %v682 = vunpack.c.l.b16 %v646
        %v683 = vunpack.c.l.b16 %v647
        %v684 = vunpack.c.l.b16 %v648
        %v685 = vpack.c.b16 %v670, %v669
        %v686 = vpack.c.b16 %v672, %v671
        %v687 = vpack.c.b16 %v674, %v673
        %v688 = vpack.c.b16 %v676, %v675
        %v689 = vpack.c.b16 %v678, %v677
        %v690 = vpack.c.b16 %v680, %v679
        %v691 = vpack.c.b16 %v682, %v681
        %v692 = vpack.c.b16 %v684, %v683
        %701 = vmatpush.bf16.msra.mxu0 %v692
        %702 = vmatpush.bf16.msra.mxu0 %v691
        %703 = vmatpush.bf16.msra.mxu0 %v690
        %704 = vmatpush.bf16.msra.mxu0 %v689
        %705 = vmatpush.bf16.msra.mxu0 %v688
        %706 = vmatpush.bf16.msra.mxu0 %v687
        %707 = vmatpush.bf16.msra.mxu0 %v686
        %708 = vmatpush.bf16.msra.mxu0 %v685
        %709 = vmatmul.bf16.gmra.mxu0 %v626
        %v710 = vpop.f32.mrf.mxu0
        %v711 = vadd.f32 %v651, %v710
        %v712 = vpop.f32.mrf.mxu0
        %v713 = vadd.f32 %v651, %v712
        %714 = vdwg.mxu0
        %v715 = vld [vmem:[#allocation11] sm:$0xf]
        %v716 = vld [vmem:[#allocation11 + $0x4] sm:$0xf]
        %v717 = vld [vmem:[#allocation11 + $0x8] sm:$0xf]
        %v718 = vld [vmem:[#allocation11 + $0xc] sm:$0xf]
        %v719 = vld [vmem:[#allocation11 + $0x10] sm:$0xf]
        %v720 = vld [vmem:[#allocation11 + $0x14] sm:$0xf]
        %v721 = vld [vmem:[#allocation11 + $0x18] sm:$0xf]
        %v722 = vld [vmem:[#allocation11 + $0x1c] sm:$0xf]
        %v723 = vld [vmem:[#allocation11 + $0x20] sm:$0xf]
        %v724 = vld [vmem:[#allocation11 + $0x24] sm:$0xf]
        %v725 = vld [vmem:[#allocation11 + $0x28] sm:$0xf]
        %v726 = vld [vmem:[#allocation11 + $0x2c] sm:$0xf]
        %v727 = vld [vmem:[#allocation11 + $0x30] sm:$0xf]
        %v728 = vld [vmem:[#allocation11 + $0x34] sm:$0xf]
        %v729 = vld [vmem:[#allocation11 + $0x38] sm:$0xf]
        %v730 = vld [vmem:[#allocation11 + $0x3c] sm:$0xf]
        %v731 = vld [vmem:[%s7] sm:$0x1]
        %v733 = vperm.slane %v731, 0
        %v751 = vunpack.c.l.b16 %v715
        %v752 = vunpack.c.l.b16 %v716
        %v753 = vunpack.c.l.b16 %v717
        %v754 = vunpack.c.l.b16 %v718
        %v755 = vunpack.c.l.b16 %v719
        %v756 = vunpack.c.l.b16 %v720
        %v757 = vunpack.c.l.b16 %v721
        %v758 = vunpack.c.l.b16 %v722
        %v759 = vunpack.c.l.b16 %v723
        %v760 = vunpack.c.l.b16 %v724
        %v761 = vunpack.c.l.b16 %v725
        %v762 = vunpack.c.l.b16 %v726
        %v763 = vunpack.c.l.b16 %v727
        %v764 = vunpack.c.l.b16 %v728
        %v765 = vunpack.c.l.b16 %v729
        %v766 = vunpack.c.l.b16 %v730
        %v767 = vpack.c.b16 %v752, %v751
        %v768 = vpack.c.b16 %v754, %v753
        %v769 = vpack.c.b16 %v756, %v755
        %v770 = vpack.c.b16 %v758, %v757
        %v771 = vpack.c.b16 %v760, %v759
        %v772 = vpack.c.b16 %v762, %v761
        %v773 = vpack.c.b16 %v764, %v763
        %v774 = vpack.c.b16 %v766, %v765
        %783 = vmatpush.bf16.msra.mxu0 %v774
        %784 = vmatpush.bf16.msra.mxu0 %v773
        %785 = vmatpush.bf16.msra.mxu0 %v772
        %786 = vmatpush.bf16.msra.mxu0 %v771
        %787 = vmatpush.bf16.msra.mxu0 %v770
        %788 = vmatpush.bf16.msra.mxu0 %v769
        %789 = vmatpush.bf16.msra.mxu0 %v768
        %790 = vmatpush.bf16.msra.mxu0 %v767
        %791 = vmatmul.bf16.gmra.mxu0 %v629
        %v792 = vpop.f32.mrf.mxu0
        %v793 = vadd.f32 %v733, %v792
        %v794 = vpop.f32.mrf.mxu0
        %v795 = vadd.f32 %v733, %v794
        %796 = vdwg.mxu0
        %v797 = vld [vmem:[#allocation13] sm:$0xf]
        %v798 = vld [vmem:[#allocation13 + $0x4] sm:$0xf]
        %v799 = vld [vmem:[#allocation13 + $0x8] sm:$0xf]
        %v800 = vld [vmem:[#allocation13 + $0xc] sm:$0xf]
        %v801 = vld [vmem:[#allocation13 + $0x10] sm:$0xf]
        %v802 = vld [vmem:[#allocation13 + $0x14] sm:$0xf]
        %v803 = vld [vmem:[#allocation13 + $0x18] sm:$0xf]
        %v804 = vld [vmem:[#allocation13 + $0x1c] sm:$0xf]
        %v805 = vld [vmem:[#allocation13 + $0x20] sm:$0xf]
        %v806 = vld [vmem:[#allocation13 + $0x24] sm:$0xf]
        %v807 = vld [vmem:[#allocation13 + $0x28] sm:$0xf]
        %v808 = vld [vmem:[#allocation13 + $0x2c] sm:$0xf]
        %v809 = vld [vmem:[#allocation13 + $0x30] sm:$0xf]
        %v810 = vld [vmem:[#allocation13 + $0x34] sm:$0xf]
        %v811 = vld [vmem:[#allocation13 + $0x38] sm:$0xf]
        %v812 = vld [vmem:[#allocation13 + $0x3c] sm:$0xf]
        %v813 = vld [vmem:[%s9] sm:$0x1]
        %v815 = vperm.slane %v813, 0
        %v833 = vunpack.c.l.b16 %v797
        %v834 = vunpack.c.l.b16 %v798
        %v835 = vunpack.c.l.b16 %v799
        %v836 = vunpack.c.l.b16 %v800
        %v837 = vunpack.c.l.b16 %v801
        %v838 = vunpack.c.l.b16 %v802
        %v839 = vunpack.c.l.b16 %v803
        %v840 = vunpack.c.l.b16 %v804
        %v841 = vunpack.c.l.b16 %v805
        %v842 = vunpack.c.l.b16 %v806
        %v843 = vunpack.c.l.b16 %v807
        %v844 = vunpack.c.l.b16 %v808
        %v845 = vunpack.c.l.b16 %v809
        %v846 = vunpack.c.l.b16 %v810
        %v847 = vunpack.c.l.b16 %v811
        %v848 = vunpack.c.l.b16 %v812
        %v849 = vpack.c.b16 %v834, %v833
        %v850 = vpack.c.b16 %v836, %v835
        %v851 = vpack.c.b16 %v838, %v837
        %v852 = vpack.c.b16 %v840, %v839
        %v853 = vpack.c.b16 %v842, %v841
        %v854 = vpack.c.b16 %v844, %v843
        %v855 = vpack.c.b16 %v846, %v845
        %v856 = vpack.c.b16 %v848, %v847
        %865 = vmatpush.bf16.msra.mxu0 %v856
        %866 = vmatpush.bf16.msra.mxu0 %v855
        %867 = vmatpush.bf16.msra.mxu0 %v854
        %868 = vmatpush.bf16.msra.mxu0 %v853
        %869 = vmatpush.bf16.msra.mxu0 %v852
        %870 = vmatpush.bf16.msra.mxu0 %v851
        %871 = vmatpush.bf16.msra.mxu0 %v850
        %872 = vmatpush.bf16.msra.mxu0 %v849
        %873 = vmatmul.bf16.gmra.mxu0 %v632
        %v874 = vpop.f32.mrf.mxu0
        %v875 = vadd.f32 %v815, %v874
        %v876 = vpop.f32.mrf.mxu0
        %v877 = vadd.f32 %v815, %v876
        %878 = vdwg.mxu0
        %v879 = vpack.c.bf16 %v711, %v711
        %v880 = vpack.c.bf16 %v713, %v713
        %v881 = vpack.c.bf16 %v793, %v793
        %v882 = vpack.c.bf16 %v795, %v795
        %v883 = vpack.c.bf16 %v875, %v875
        %v884 = vpack.c.bf16 %v877, %v877
        %v885 = vld [vmem:[%s546] sm:$0xff]
        %v886 = vld [vmem:[%s546 + $0x8] sm:$0xff]
        %vm887 = vcmp.eq.f32.partialorder %v885, 0.0
        %vm888 = vcmp.eq.f32.partialorder %v886, 0.0
        %v889 = vsel %vm887, -1e+09, 0.0
        %v890 = vsel %vm888, -1e+09, 0.0
        %v893 = vunpack.c.l.b16 %v879
        %v894 = vunpack.c.l.b16 %v880
        %v895 = vpack.c.b16 %v894, %v893
        %v898 = vunpack.c.l.b16 %v881
        %v899 = vunpack.c.l.b16 %v882
        %v900 = vpack.c.b16 %v899, %v898
        %vm901 = vcmask 261120
        %v903 = vsel %vm901, %v895, 0
        %v906 = vsel %vm901, %v900, 0
        %908 = vmatpush.bf16.xpose.msra.mxu0 0
        %909 = vmatpush.bf16.xpose.msra.mxu0 0
        %910 = vmatpush.bf16.xpose.msra.mxu0 0
        %911 = vmatpush.bf16.xpose.msra.mxu0 0
        %912 = vmatpush.bf16.xpose.msra.mxu0 0
        %913 = vmatpush.bf16.xpose.msra.mxu0 0
        %914 = vmatpush.bf16.xpose.msra.mxu0 0
        %915 = vmatpush.bf16.xpose.msra.mxu0 %v906
        %916 = vmatmul.bf16.gmra.mxu0 %v903
        %v917 = vpop.f32.mrf.mxu0
        %v918 = vadd.f32 0.0, %v917
        %v919 = vpop.f32.mrf.mxu0
        %v920 = vadd.f32 0.0, %v919
        %921 = vdwg.mxu0
        %v922 = vmul.f32 %v918, 0.17677669
        %v923 = vmul.f32 %v920, 0.17677669
        %v924 = vadd.f32 %v922, %v889
        %v925 = vadd.f32 %v923, %v890
        %vm926 = vcmask 130048
        %v927 = vsel %vm926, %v924, -inf
        %928 = vmax.xlane.f32.xlu0 %v927
        %v929 = vpop.xlane.xlu0 %928
        %v930 = vsel %vm926, %v925, -inf
        %931 = vmax.xlane.f32.xlu0 %v930
        %v932 = vpop.xlane.xlu0 %931
        %v933 = vsub.f32 %v924, %v929
        %v934 = vsub.f32 %v925, %v932
        %v935 = vmul.f32 %v933, 1.442695
        %v936 = vpow.pop %v935
        %v937 = vmul.f32 %v934, 1.442695
        %v938 = vpow.pop %v937
        %v939 = vsel %vm926, %v936, 0.0
        %940 = vadd.xlane.f32.xlu0 %v939
        %v941 = vpop.xlane.xlu0 %940
        %v942 = vsel %vm926, %v938, 0.0
        %943 = vadd.xlane.f32.xlu0 %v942
        %v944 = vpop.xlane.xlu0 %943
        %v945 = vrcp.pop %v941
        %v946 = vrcp.pop %v944
        %v947 = vmul.f32 %v936, %v945
        %v948 = vmul.f32 %v938, %v946
        %v949 = vpack.c.bf16 %v948, %v947
        %v952 = vunpack.c.l.b16 %v883
        %v953 = vunpack.c.l.b16 %v884
        %v954 = vpack.c.b16 %v953, %v952
        %v957 = vsel %vm926, %v949, 0
        %959 = vmatpush.bf16.msra.mxu0 0
        %960 = vmatpush.bf16.msra.mxu0 0
        %961 = vmatpush.bf16.msra.mxu0 0
        %962 = vmatpush.bf16.msra.mxu0 0
        %963 = vmatpush.bf16.msra.mxu0 0
        %964 = vmatpush.bf16.msra.mxu0 0
        %965 = vmatpush.bf16.msra.mxu0 0
        %966 = vmatpush.bf16.msra.mxu0 %v954
        %967 = vmatmul.bf16.gmra.mxu0 %v957
        %v968 = vpop.f32.mrf.mxu0
        %v969 = vadd.f32 0.0, %v968
        %v970 = vpop.f32.mrf.mxu0
        %v971 = vadd.f32 0.0, %v970
        %972 = vdwg.mxu0
        %v973 = vpack.c.bf16 %v971, %v969
        %v974 = vld [vmem:[#allocation14] sm:$0xf]
        %v975 = vld [vmem:[#allocation14 + $0x4] sm:$0xf]
        %v976 = vld [vmem:[#allocation14 + $0x8] sm:$0xf]
        %v977 = vld [vmem:[#allocation14 + $0xc] sm:$0xf]
        %978 = vrot.lane.b32.xlu0 %v895, 96
        %v979 = vpop.permute.xlu0 %978
        %980 = vrot.lane.b32.xlu0 %v900, 96
        %v981 = vpop.permute.xlu0 %980
        %v983 = vsel %vm901, %v979, 0
        %v986 = vsel %vm901, %v981, 0
        %988 = vmatpush.bf16.xpose.msra.mxu0 0
        %989 = vmatpush.bf16.xpose.msra.mxu0 0
        %990 = vmatpush.bf16.xpose.msra.mxu0 0
        %991 = vmatpush.bf16.xpose.msra.mxu0 0
        %992 = vmatpush.bf16.xpose.msra.mxu0 0
        %993 = vmatpush.bf16.xpose.msra.mxu0 0
        %994 = vmatpush.bf16.xpose.msra.mxu0 0
        %995 = vmatpush.bf16.xpose.msra.mxu0 %v986
        %996 = vmatmul.bf16.gmra.mxu0 %v983
        %v997 = vpop.f32.mrf.mxu0
        %v998 = vadd.f32 0.0, %v997
        %v999 = vpop.f32.mrf.mxu0
        %v1000 = vadd.f32 0.0, %v999
        %1001 = vdwg.mxu0
        %v1002 = vmul.f32 %v998, 0.17677669
        %v1003 = vmul.f32 %v1000, 0.17677669
        %v1004 = vadd.f32 %v1002, %v889
        %v1005 = vadd.f32 %v1003, %v890
        %v1006 = vsel %vm926, %v1004, -inf
        %1007 = vmax.xlane.f32.xlu0 %v1006
        %v1008 = vpop.xlane.xlu0 %1007
        %v1009 = vsel %vm926, %v1005, -inf
        %1010 = vmax.xlane.f32.xlu0 %v1009
        %v1011 = vpop.xlane.xlu0 %1010
        %v1012 = vsub.f32 %v1004, %v1008
        %v1013 = vsub.f32 %v1005, %v1011
        %v1014 = vmul.f32 %v1012, 1.442695
        %v1015 = vpow.pop %v1014
        %v1016 = vmul.f32 %v1013, 1.442695
        %v1017 = vpow.pop %v1016
        %v1018 = vsel %vm926, %v1015, 0.0
        %1019 = vadd.xlane.f32.xlu0 %v1018
        %v1020 = vpop.xlane.xlu0 %1019
        %v1021 = vsel %vm926, %v1017, 0.0
        %1022 = vadd.xlane.f32.xlu0 %v1021
        %v1023 = vpop.xlane.xlu0 %1022
        %v1024 = vrcp.pop %v1020
        %v1025 = vrcp.pop %v1023
        %v1026 = vmul.f32 %v1015, %v1024
        %v1027 = vmul.f32 %v1017, %v1025
        %v1028 = vpack.c.bf16 %v1027, %v1026
        %1029 = vrot.lane.b32.xlu0 %v954, 96
        %v1030 = vpop.permute.xlu0 %1029
        %v1033 = vsel %vm926, %v1028, 0
        %1035 = vmatpush.bf16.msra.mxu0 0
        %1036 = vmatpush.bf16.msra.mxu0 0
        %1037 = vmatpush.bf16.msra.mxu0 0
        %1038 = vmatpush.bf16.msra.mxu0 0
        %1039 = vmatpush.bf16.msra.mxu0 0
        %1040 = vmatpush.bf16.msra.mxu0 0
        %1041 = vmatpush.bf16.msra.mxu0 0
        %1042 = vmatpush.bf16.msra.mxu0 %v1030
        %1043 = vmatmul.bf16.gmra.mxu0 %v1033
        %v1044 = vpop.f32.mrf.mxu0
        %v1045 = vadd.f32 0.0, %v1044
        %v1046 = vpop.f32.mrf.mxu0
        %v1047 = vadd.f32 0.0, %v1046
        %1048 = vdwg.mxu0
        %v1049 = vpack.c.bf16 %v1047, %v1045
        %v1050 = vld [vmem:[#allocation14 + $0x10] sm:$0xf]
        %v1051 = vld [vmem:[#allocation14 + $0x14] sm:$0xf]
        %v1052 = vld [vmem:[#allocation14 + $0x18] sm:$0xf]
        %v1053 = vld [vmem:[#allocation14 + $0x1c] sm:$0xf]
        %v1058 = vunpack.c.l.b16 %v1050
        %v1059 = vunpack.c.l.b16 %v1051
        %v1060 = vunpack.c.l.b16 %v1052
        %v1061 = vunpack.c.l.b16 %v1053
        %v1062 = vpack.c.b16 %v1059, %v1058
        %v1063 = vpack.c.b16 %v1061, %v1060
        %v1067 = vsel %vm901, %v1049, 0
        %1069 = vmatpush.bf16.msra.mxu0 0
        %1070 = vmatpush.bf16.msra.mxu0 0
        %1071 = vmatpush.bf16.msra.mxu0 0
        %1072 = vmatpush.bf16.msra.mxu0 0
        %1073 = vmatpush.bf16.msra.mxu0 0
        %1074 = vmatpush.bf16.msra.mxu0 0
        %1075 = vmatpush.bf16.msra.mxu0 %v1063
        %1076 = vmatpush.bf16.msra.mxu0 %v1062
        %1077 = vmatmul.bf16.gmra.mxu0 %v1067
        %v1078 = vpop.f32.mrf.mxu0
        %v1079 = vadd.f32 0.0, %v1078
        %v1080 = vpop.f32.mrf.mxu0
        %v1081 = vadd.f32 0.0, %v1080
        %1082 = vdwg.mxu0
        %v1087 = vunpack.c.l.b16 %v974
        %v1088 = vunpack.c.l.b16 %v975
        %v1089 = vunpack.c.l.b16 %v976
        %v1090 = vunpack.c.l.b16 %v977
        %v1091 = vpack.c.b16 %v1088, %v1087
        %v1092 = vpack.c.b16 %v1090, %v1089
        %v1096 = vsel %vm901, %v973, 0
        %1098 = vmatpush.bf16.msra.mxu0 0
        %1099 = vmatpush.bf16.msra.mxu0 0
        %1100 = vmatpush.bf16.msra.mxu0 0
        %1101 = vmatpush.bf16.msra.mxu0 0
        %1102 = vmatpush.bf16.msra.mxu0 0
        %1103 = vmatpush.bf16.msra.mxu0 0
        %1104 = vmatpush.bf16.msra.mxu0 %v1092
        %1105 = vmatpush.bf16.msra.mxu0 %v1091
        %1106 = vmatmul.bf16.gmra.mxu0 %v1096
        %v1107 = vpop.f32.mrf.mxu0
        %v1108 = vadd.f32 %v1079, %v1107
        %v1109 = vpop.f32.mrf.mxu0
        %v1110 = vadd.f32 %v1081, %v1109
        %1111 = vdwg.mxu0
        %1112 = vrot.lane.b32.xlu0 %v895, 64
        %v1113 = vpop.permute.xlu0 %1112
        %1114 = vrot.lane.b32.xlu0 %v900, 64
        %v1115 = vpop.permute.xlu0 %1114
        %v1117 = vsel %vm901, %v1113, 0
        %v1120 = vsel %vm901, %v1115, 0
        %1122 = vmatpush.bf16.xpose.msra.mxu0 0
        %1123 = vmatpush.bf16.xpose.msra.mxu0 0
        %1124 = vmatpush.bf16.xpose.msra.mxu0 0
        %1125 = vmatpush.bf16.xpose.msra.mxu0 0
        %1126 = vmatpush.bf16.xpose.msra.mxu0 0
        %1127 = vmatpush.bf16.xpose.msra.mxu0 0
        %1128 = vmatpush.bf16.xpose.msra.mxu0 0
        %1129 = vmatpush.bf16.xpose.msra.mxu0 %v1120
        %1130 = vmatmul.bf16.gmra.mxu0 %v1117
        %v1131 = vpop.f32.mrf.mxu0
        %v1132 = vadd.f32 0.0, %v1131
        %v1133 = vpop.f32.mrf.mxu0
        %v1134 = vadd.f32 0.0, %v1133
        %1135 = vdwg.mxu0
        %v1136 = vmul.f32 %v1132, 0.17677669
        %v1137 = vmul.f32 %v1134, 0.17677669
        %v1138 = vadd.f32 %v1136, %v889
        %v1139 = vadd.f32 %v1137, %v890
        %v1140 = vsel %vm926, %v1138, -inf
        %1141 = vmax.xlane.f32.xlu0 %v1140
        %v1142 = vpop.xlane.xlu0 %1141
        %v1143 = vsel %vm926, %v1139, -inf
        %1144 = vmax.xlane.f32.xlu0 %v1143
        %v1145 = vpop.xlane.xlu0 %1144
        %v1146 = vsub.f32 %v1138, %v1142
        %v1147 = vsub.f32 %v1139, %v1145
        %v1148 = vmul.f32 %v1146, 1.442695
        %v1149 = vpow.pop %v1148
        %v1150 = vmul.f32 %v1147, 1.442695
        %v1151 = vpow.pop %v1150
        %v1152 = vsel %vm926, %v1149, 0.0
        %1153 = vadd.xlane.f32.xlu0 %v1152
        %v1154 = vpop.xlane.xlu0 %1153
        %v1155 = vsel %vm926, %v1151, 0.0
        %1156 = vadd.xlane.f32.xlu0 %v1155
        %v1157 = vpop.xlane.xlu0 %1156
        %v1158 = vrcp.pop %v1154
        %v1159 = vrcp.pop %v1157
        %v1160 = vmul.f32 %v1149, %v1158
        %v1161 = vmul.f32 %v1151, %v1159
        %v1162 = vpack.c.bf16 %v1161, %v1160
        %1163 = vrot.lane.b32.xlu0 %v954, 64
        %v1164 = vpop.permute.xlu0 %1163
        %v1167 = vsel %vm926, %v1162, 0
        %1169 = vmatpush.bf16.msra.mxu0 0
        %1170 = vmatpush.bf16.msra.mxu0 0
        %1171 = vmatpush.bf16.msra.mxu0 0
        %1172 = vmatpush.bf16.msra.mxu0 0
        %1173 = vmatpush.bf16.msra.mxu0 0
        %1174 = vmatpush.bf16.msra.mxu0 0
        %1175 = vmatpush.bf16.msra.mxu0 0
        %1176 = vmatpush.bf16.msra.mxu0 %v1164
        %1177 = vmatmul.bf16.gmra.mxu0 %v1167
        %v1178 = vpop.f32.mrf.mxu0
        %v1179 = vadd.f32 0.0, %v1178
        %v1180 = vpop.f32.mrf.mxu0
        %v1181 = vadd.f32 0.0, %v1180
        %1182 = vdwg.mxu0
        %v1183 = vpack.c.bf16 %v1181, %v1179
        %v1184 = vld [vmem:[#allocation14 + $0x20] sm:$0xf]
        %v1185 = vld [vmem:[#allocation14 + $0x24] sm:$0xf]
        %v1186 = vld [vmem:[#allocation14 + $0x28] sm:$0xf]
        %v1187 = vld [vmem:[#allocation14 + $0x2c] sm:$0xf]
        %v1192 = vunpack.c.l.b16 %v1184
        %v1193 = vunpack.c.l.b16 %v1185
        %v1194 = vunpack.c.l.b16 %v1186
        %v1195 = vunpack.c.l.b16 %v1187
        %v1196 = vpack.c.b16 %v1193, %v1192
        %v1197 = vpack.c.b16 %v1195, %v1194
        %v1201 = vsel %vm901, %v1183, 0
        %1203 = vmatpush.bf16.msra.mxu0 0
        %1204 = vmatpush.bf16.msra.mxu0 0
        %1205 = vmatpush.bf16.msra.mxu0 0
        %1206 = vmatpush.bf16.msra.mxu0 0
        %1207 = vmatpush.bf16.msra.mxu0 0
        %1208 = vmatpush.bf16.msra.mxu0 0
        %1209 = vmatpush.bf16.msra.mxu0 %v1197
        %1210 = vmatpush.bf16.msra.mxu0 %v1196
        %1211 = vmatmul.bf16.gmra.mxu0 %v1201
        %v1212 = vpop.f32.mrf.mxu0
        %v1213 = vadd.f32 0.0, %v1212
        %v1214 = vpop.f32.mrf.mxu0
        %v1215 = vadd.f32 0.0, %v1214
        %1216 = vdwg.mxu0
        %v1217 = vadd.f32 %v1108, %v1213
        %v1218 = vadd.f32 %v1110, %v1215
        %1219 = vrot.lane.b32.xlu0 %v895, 32
        %v1220 = vpop.permute.xlu0 %1219
        %1221 = vrot.lane.b32.xlu0 %v900, 32
        %v1222 = vpop.permute.xlu0 %1221
        %v1224 = vsel %vm901, %v1220, 0
        %v1227 = vsel %vm901, %v1222, 0
        %1229 = vmatpush.bf16.xpose.msra.mxu0 0
        %1230 = vmatpush.bf16.xpose.msra.mxu0 0
        %1231 = vmatpush.bf16.xpose.msra.mxu0 0
        %1232 = vmatpush.bf16.xpose.msra.mxu0 0
        %1233 = vmatpush.bf16.xpose.msra.mxu0 0
        %1234 = vmatpush.bf16.xpose.msra.mxu0 0
        %1235 = vmatpush.bf16.xpose.msra.mxu0 0
        %1236 = vmatpush.bf16.xpose.msra.mxu0 %v1227
        %1237 = vmatmul.bf16.gmra.mxu0 %v1224
        %v1238 = vpop.f32.mrf.mxu0
        %v1239 = vadd.f32 0.0, %v1238
        %v1240 = vpop.f32.mrf.mxu0
        %v1241 = vadd.f32 0.0, %v1240
        %1242 = vdwg.mxu0
        %v1243 = vmul.f32 %v1239, 0.17677669
        %v1244 = vmul.f32 %v1241, 0.17677669
        %v1245 = vadd.f32 %v1243, %v889
        %v1246 = vadd.f32 %v1244, %v890
        %v1247 = vsel %vm926, %v1245, -inf
        %1248 = vmax.xlane.f32.xlu0 %v1247
        %v1249 = vpop.xlane.xlu0 %1248
        %v1250 = vsel %vm926, %v1246, -inf
        %1251 = vmax.xlane.f32.xlu0 %v1250
        %v1252 = vpop.xlane.xlu0 %1251
        %v1253 = vsub.f32 %v1245, %v1249
        %v1254 = vsub.f32 %v1246, %v1252
        %v1255 = vmul.f32 %v1253, 1.442695
        %v1256 = vpow.pop %v1255
        %v1257 = vmul.f32 %v1254, 1.442695
        %v1258 = vpow.pop %v1257
        %v1259 = vsel %vm926, %v1256, 0.0
        %1260 = vadd.xlane.f32.xlu0 %v1259
        %v1261 = vpop.xlane.xlu0 %1260
        %v1262 = vsel %vm926, %v1258, 0.0
        %1263 = vadd.xlane.f32.xlu0 %v1262
        %v1264 = vpop.xlane.xlu0 %1263
        %v1265 = vrcp.pop %v1261
        %v1266 = vrcp.pop %v1264
        %v1267 = vmul.f32 %v1256, %v1265
        %v1268 = vmul.f32 %v1258, %v1266
        %v1269 = vpack.c.bf16 %v1268, %v1267
        %1270 = vrot.lane.b32.xlu0 %v954, 32
        %v1271 = vpop.permute.xlu0 %1270
        %v1274 = vsel %vm926, %v1269, 0
        %1276 = vmatpush.bf16.msra.mxu0 0
        %1277 = vmatpush.bf16.msra.mxu0 0
        %1278 = vmatpush.bf16.msra.mxu0 0
        %1279 = vmatpush.bf16.msra.mxu0 0
        %1280 = vmatpush.bf16.msra.mxu0 0
        %1281 = vmatpush.bf16.msra.mxu0 0
        %1282 = vmatpush.bf16.msra.mxu0 0
        %1283 = vmatpush.bf16.msra.mxu0 %v1271
        %1284 = vmatmul.bf16.gmra.mxu0 %v1274
        %v1285 = vpop.f32.mrf.mxu0
        %v1286 = vadd.f32 0.0, %v1285
        %v1287 = vpop.f32.mrf.mxu0
        %v1288 = vadd.f32 0.0, %v1287
        %1289 = vdwg.mxu0
        %v1290 = vpack.c.bf16 %v1288, %v1286
        %v1291 = vld [vmem:[#allocation14 + $0x30] sm:$0xf]
        %v1292 = vld [vmem:[#allocation14 + $0x34] sm:$0xf]
        %v1293 = vld [vmem:[#allocation14 + $0x38] sm:$0xf]
        %v1294 = vld [vmem:[#allocation14 + $0x3c] sm:$0xf]
        %v1299 = vunpack.c.l.b16 %v1291
        %v1300 = vunpack.c.l.b16 %v1292
        %v1301 = vunpack.c.l.b16 %v1293
        %v1302 = vunpack.c.l.b16 %v1294
        %v1303 = vpack.c.b16 %v1300, %v1299
        %v1304 = vpack.c.b16 %v1302, %v1301
        %v1308 = vsel %vm901, %v1290, 0
        %1310 = vmatpush.bf16.msra.mxu0 0
        %1311 = vmatpush.bf16.msra.mxu0 0
        %1312 = vmatpush.bf16.msra.mxu0 0
        %1313 = vmatpush.bf16.msra.mxu0 0
        %1314 = vmatpush.bf16.msra.mxu0 0
        %1315 = vmatpush.bf16.msra.mxu0 0
        %1316 = vmatpush.bf16.msra.mxu0 %v1304
        %1317 = vmatpush.bf16.msra.mxu0 %v1303
        %1318 = vmatmul.bf16.gmra.mxu0 %v1308
        %v1319 = vpop.f32.mrf.mxu0
        %v1320 = vadd.f32 0.0, %v1319
        %v1321 = vpop.f32.mrf.mxu0
        %v1322 = vadd.f32 0.0, %v1321
        %1323 = vdwg.mxu0
        %v1324 = vadd.f32 %v1217, %v1320
        %v1325 = vadd.f32 %v1218, %v1322
        %v1326 = vld [vmem:[%s11] sm:$0x1]
        %v1328 = vperm.slane %v1326, 0
        %v1330 = vadd.f32 %v1324, %v1328
        %v1331 = vadd.f32 %v1325, %v1328
        %1332 = vst [vmem:[%s622] sm:$0xff] %v1330
        %1333 = vst [vmem:[%s622 + $0x8] sm:$0xff] %v1331
        %s1334 = sand.u32 %s317, 1
        %s1335 = scalar_lea.sflag [#allocation4], %s1334
        %s1336 = sand.u32 %s317, 1
        %s1337 = smul.addr %s1336, 16
        %s1338 = scalar_lea.vmem [#allocation16], %s1337
        // Predicated region
        $region101: #{tpu_custom_call.1} parent=67 // pred_check
          %p1339 = pneg %p327
        $region102: #{tpu_custom_call.1} parent=67 // pred_check_branch
          %1341 = sbr.rel (%p1339) target = $region104
        $region103: #{tpu_custom_call.1} parent=67 // pred_region
          %1343 = vsyncadd %s1335, 0
          %s1344 = smul.addr %s37, 2
          %s1345 = smul.addr %s1344, 8
          %s1346 = scalar_lea.hbm %s12, %s1345
          %s1347 = sshll.u32 %s1338, 4
          %s1348 = int_to_ptr.vmem [resolvable:$true] %s1347
          %s1349 = sshll.u32 %s1346, 4
          %s1350 = int_to_ptr.hbm [resolvable:$true] %s1349
          %1355 = dma.vmem_to_hbm [thread:$0]  %s1348, 256, %s1350, %s1335, 128, 128, 8
        $region104: #{tpu_custom_call.1} parent=67 // pred_fallthru
          _
      $region68: #{tpu_custom_call.1} parent=5 // pred_fallthru
        _
      %p1356 = scmp.le.s32.totalorder 2, %s32
      // Predicated region
      $region105: #{tpu_custom_call.1} parent=5 // pred_check
        %p1357 = pneg %p1356
      $region106: #{tpu_custom_call.1} parent=5 // pred_check_branch
        %1359 = sbr.rel (%p1357) target = $region108
      $region107: #{tpu_custom_call.1} parent=5 // pred_region
        %s1360 = ssub.s32 %s32, 2
        // Predicated region
        $region109: #{tpu_custom_call.1} parent=107 // pred_check
          %p1361 = pneg %p333
        $region110: #{tpu_custom_call.1} parent=107 // pred_check_branch
          %1363 = sbr.rel (%p1361) target = $region112
        $region111: #{tpu_custom_call.1} parent=107 // pred_region
          %s1364 = sand.u32 %s318, 1
          %s1365 = scalar_lea.sflag [#allocation4], %s1364
          %s1366 = sand.u32 %s318, 1
          %s1367 = smul.addr %s1366, 16
          %s1368 = scalar_lea.vmem [#allocation16], %s1367
          %1370 = dma.done %s1365, 256
        $region112: #{tpu_custom_call.1} parent=107 // pred_fallthru
          _
      $region108: #{tpu_custom_call.1} parent=5 // pred_fallthru
        _
    $region6: #{tpu_custom_call.1} parent=1 // loop_footer
      %s36 = sadd.s32 1, %s32
    $region7: #{tpu_custom_call.1} parent=1 // loop_footer_branch
      %31 = sbr.rel target = $region3
    $region8: #{tpu_custom_call.1} parent=1 // loop_exit
      _
    %1371 = vsyncpa [#allocation3], 1
    %s1372 = scalar_lea.sflag [#allocation3], 1
    %1373 = vsyncpa %s1372, 1
    %1374 = vsyncpa [#allocation6], 1
    %s1375 = scalar_lea.sflag [#allocation6], 1
    %1376 = vsyncpa %s1375, 1
    %1377 = vsyncpa [#allocation9], 1
    %s1378 = scalar_lea.sflag [#allocation9], 1
    %1379 = vsyncpa %s1378, 1
    %1380 = vsyncpa [#allocation12], 1
    %1381 = vsyncpa [#allocation15], 1
    %1382 = vsyncpa [#allocation4], 1
    %s1383 = scalar_lea.sflag [#allocation4], 1
    %1384 = vsyncpa %s1383, 1

</llo_original>
